<compile_context>
chip_gen: v6e
topology: v6e:2x2x1
jax: 0.10.0
libtpu: 0.0.40
codegen_flags: <defaults>
</compile_context>

<pallas_src>
import functools
import math

import jax
import jax.numpy as jnp
from jax.experimental import pallas as pl
from jax.experimental.pallas import tpu as pltpu


_VMEM_LIMIT = 64 * 1024 * 1024     # safe on v5e/v6e (128 MiB) and v7x (64 MiB)
_K_COLLAPSE_MAX = 4096             # collapse the K grid axis when K <= this


def _round_up(x, m):
    return ((x + m - 1) // m) * m


def _pick_tile(dim, targets=(512, 256, 128)):
    """Prefer large HBM-roofline-friendly tiles; fall back to the full extent."""
    for t in targets:
        if dim % t == 0:
            return t
    return dim


def _pad_seq(tok, att):
    """Pad S so B*S tiles cleanly (padded keys masked; [CLS] row unaffected)."""
    S = tok.shape[1]
    target = _round_up(S, 8) if S <= 128 else _round_up(S, 128)
    if target != S:
        pad = ((0, 0), (0, target - S))
        tok = jnp.pad(tok, pad)
        att = jnp.pad(att, pad)
    return tok, att, target


def _apply_activation(y, activation):
    if activation == "gelu":
        # TODO(synk): HF BERT uses the exact erf GELU; tanh approximation here.
        y = 0.5 * y * (1.0 + jnp.tanh(
            0.7978845608028654 * (y + 0.044715 * y * y * y)))
    elif activation == "tanh":
        y = jnp.tanh(y)
    return y


# ---------------------------------------------------------------------------
# Kernel 1: dense (X @ W + b, optional GELU / tanh).  Collapsed-K variant has
# no accumulator / pl.when; the K-tiled accumulator variant is a fallback.
# ---------------------------------------------------------------------------

def _dense_kernel(x_ref, w_ref, b_ref, o_ref, *, activation):
    y = jnp.dot(x_ref[...], w_ref[...], preferred_element_type=jnp.float32)
    y = _apply_activation(y + b_ref[...], activation)
    o_ref[...] = y.astype(o_ref.dtype)


def _dense_acc_kernel(x_ref, w_ref, b_ref, o_ref, acc_ref, *, activation):
    @pl.when(pl.program_id(2) == 0)
    def _():
        acc_ref[...] = jnp.zeros_like(acc_ref)

    acc_ref[...] += jnp.dot(x_ref[...], w_ref[...],
                            preferred_element_type=jnp.float32)

    @pl.when(pl.program_id(2) == pl.num_programs(2) - 1)
    def _():
        y = _apply_activation(acc_ref[...] + b_ref[...], activation)
        o_ref[...] = y.astype(o_ref.dtype)


def dense(x, w, b, activation=None, out_dtype=jnp.bfloat16):
    M, K = x.shape
    N = w.shape[1]
    tm, tn = _pick_tile(M), _pick_tile(N)

    if K <= _K_COLLAPSE_MAX:
        return pl.pallas_call(
            functools.partial(_dense_kernel, activation=activation),
            out_shape=jax.ShapeDtypeStruct((M, N), out_dtype),
            grid=(M // tm, N // tn),
            in_specs=[pl.BlockSpec((tm, K), lambda i, j: (i, 0)),
                      pl.BlockSpec((K, tn), lambda i, j: (0, j)),
                      pl.BlockSpec((1, tn), lambda i, j: (0, j))],
            out_specs=pl.BlockSpec((tm, tn), lambda i, j: (i, j)),
            compiler_params=pltpu.CompilerParams(
                dimension_semantics=("parallel", "parallel"),
                vmem_limit_bytes=_VMEM_LIMIT),
        )(x, w, b)

    tk = _pick_tile(K)
    return pl.pallas_call(
        functools.partial(_dense_acc_kernel, activation=activation),
        out_shape=jax.ShapeDtypeStruct((M, N), out_dtype),
        grid=(M // tm, N // tn, K // tk),
        in_specs=[pl.BlockSpec((tm, tk), lambda i, j, k: (i, k)),
                  pl.BlockSpec((tk, tn), lambda i, j, k: (k, j)),
                  pl.BlockSpec((1, tn), lambda i, j, k: (0, j))],
        out_specs=pl.BlockSpec((tm, tn), lambda i, j, k: (i, j)),
        scratch_shapes=[pltpu.VMEM((tm, tn), jnp.float32)],
        compiler_params=pltpu.CompilerParams(
            dimension_semantics=("parallel", "parallel", "arbitrary"),
            vmem_limit_bytes=_VMEM_LIMIT),
    )(x, w, b)


# ---------------------------------------------------------------------------
# Kernel 2: dense + bias + residual add + LayerNorm (fused epilogue), K collapsed
# (K = hidden or intermediate for BERT; whole weight block fits VMEM).
# N (= hidden) is kept whole in the block so row statistics are available.
# ---------------------------------------------------------------------------

def _dense_res_ln_kernel(x_ref, w_ref, b_ref, res_ref, g_ref, beta_ref,
                         o_ref, *, eps):
    y = jnp.dot(x_ref[...], w_ref[...], preferred_element_type=jnp.float32)
    y = y + b_ref[...] + res_ref[...].astype(jnp.float32)
    mu = jnp.mean(y, axis=-1, keepdims=True)
    var = jnp.mean(jnp.square(y - mu), axis=-1, keepdims=True)
    out = (y - mu) * jax.lax.rsqrt(var + eps) * g_ref[...] + beta_ref[...]
    o_ref[...] = out.astype(o_ref.dtype)


def dense_res_ln(x, w, b, res, g, beta, eps=1e-12, out_dtype=jnp.bfloat16):
    M, K = x.shape
    N = w.shape[1]
    tm = _pick_tile(M)
    # TODO(synk): add a K-tiled accumulator fallback if K ever exceeds ~4K.
    return pl.pallas_call(
        functools.partial(_dense_res_ln_kernel, eps=eps),
        out_shape=jax.ShapeDtypeStruct((M, N), out_dtype),
        grid=(M // tm,),
        in_specs=[pl.BlockSpec((tm, K), lambda i: (i, 0)),
                  pl.BlockSpec((K, N), lambda i: (0, 0)),
                  pl.BlockSpec((1, N), lambda i: (0, 0)),
                  pl.BlockSpec((tm, N), lambda i: (i, 0)),
                  pl.BlockSpec((1, N), lambda i: (0, 0)),
                  pl.BlockSpec((1, N), lambda i: (0, 0))],
        out_specs=pl.BlockSpec((tm, N), lambda i: (i, 0)),
        compiler_params=pltpu.CompilerParams(
            dimension_semantics=("parallel",),
            vmem_limit_bytes=_VMEM_LIMIT),
    )(x, w, b, res, g, beta)


# ---------------------------------------------------------------------------
# Kernel 3: fused embedding add (word + position + token-type) + LayerNorm.
# Saves the extra HBM round-trip of a pre-added `emb` tensor.
# ---------------------------------------------------------------------------

def _embed_ln_kernel(word_ref, pos_ref, type_ref, g_ref, b_ref, o_ref, *, eps):
    x = word_ref[0] + pos_ref[...] + type_ref[...]
    mu = jnp.mean(x, axis=-1, keepdims=True)
    var = jnp.mean(jnp.square(x - mu), axis=-1, keepdims=True)
    out = (x - mu) * jax.lax.rsqrt(var + eps) * g_ref[...] + b_ref[...]
    o_ref[0] = out.astype(o_ref.dtype)


def embed_layernorm(word, pos, type_row, g, b, eps=1e-12, out_dtype=jnp.bfloat16):
    B, S, H = word.shape
    ts = _pick_tile(S)
    return pl.pallas_call(
        functools.partial(_embed_ln_kernel, eps=eps),
        out_shape=jax.ShapeDtypeStruct((B, S, H), out_dtype),
        grid=(B, S // ts),
        in_specs=[pl.BlockSpec((1, ts, H), lambda i, s: (i, s, 0)),
                  pl.BlockSpec((ts, H), lambda i, s: (s, 0)),
                  pl.BlockSpec((1, H), lambda i, s: (0, 0)),
                  pl.BlockSpec((1, H), lambda i, s: (0, 0)),
                  pl.BlockSpec((1, H), lambda i, s: (0, 0))],
        out_specs=pl.BlockSpec((1, ts, H), lambda i, s: (i, s, 0)),
        compiler_params=pltpu.CompilerParams(
            dimension_semantics=("parallel", "parallel")),
    )(word, pos, type_row, g, b)


# ---------------------------------------------------------------------------
# Kernel 4: attention on a (batch, head) grid.  Q/K/V arrive head-major
# (B, nH, S, d); each grid step DMAs three (S, d) tiles, so head slicing
# happens at DMA level (no in-kernel 64-lane slices), the output is a single
# contiguous (S, d) block store, and B*nH steps shard across TensorCores.
# The 1/sqrt(d) scale is pre-folded into w_qkv's Q columns.
# ---------------------------------------------------------------------------

def _attention_kernel(q_ref, k_ref, v_ref, m_ref, o_ref):
    q = q_ref[0, 0]                      # (S, d) bf16
    k = k_ref[0, 0]                      # (S, d) bf16
    v = v_ref[0, 0]                      # (S, d) bf16
    # TODO(synk): for long sequences (S >= ~512) switch to a flash-style loop
    # over KV tiles with online softmax instead of materializing (S, S) scores.
    s = jax.lax.dot_general(q, k, dimension_numbers=(((1,), (1,)), ((), ())),
                            preferred_element_type=jnp.float32)     # (S, S)
    s = s + m_ref[0]                                                 # (1, S) mask
    s = s - jnp.max(s, axis=-1, keepdims=True)
    p = jnp.exp(s)
    p = p * pl.reciprocal(jnp.sum(p, axis=-1, keepdims=True), approx=False)
    ctx = jnp.dot(p.astype(v.dtype), v, preferred_element_type=jnp.float32)
    o_ref[0, 0] = ctx.astype(o_ref.dtype)


def attention(q, k, v, amask):
    B, nH, S, d = q.shape
    return pl.pallas_call(
        _attention_kernel,
        out_shape=jax.ShapeDtypeStruct((B, nH, S, d), jnp.bfloat16),
        grid=(B, nH),
        in_specs=[pl.BlockSpec((1, 1, S, d), lambda b, h: (b, h, 0, 0)),
                  pl.BlockSpec((1, 1, S, d), lambda b, h: (b, h, 0, 0)),
                  pl.BlockSpec((1, 1, S, d), lambda b, h: (b, h, 0, 0)),
                  pl.BlockSpec((1, 1, S), lambda b, h: (b, 0, 0))],
        out_specs=pl.BlockSpec((1, 1, S, d), lambda b, h: (b, h, 0, 0)),
        compiler_params=pltpu.CompilerParams(
            dimension_semantics=("parallel", "parallel")),
    )(q, k, v, amask)


# ---------------------------------------------------------------------------
# Deterministic parameter init (synthetic weights, not a checkpoint load).
# Matmul weights stored bf16 (MXU inputs); embeddings / biases / LN params f32.
# ---------------------------------------------------------------------------

def init_params(key, vocab, max_pos, H, n_layers, inter, n_heads):
    d = H // n_heads
    q_scale = 1.0 / math.sqrt(d)

    def norm(k, shape):
        return 0.02 * jax.random.normal(k, shape, jnp.float32)

    keys = jax.random.split(key, 4 + n_layers)
    params = {
        "word_emb": norm(keys[0], (vocab, H)),
        "pos_emb": norm(keys[1], (max_pos, H)),
        "type_emb": norm(keys[2], (2, H)),
        "emb_ln_g": jnp.ones((1, H), jnp.float32),
        "emb_ln_b": jnp.zeros((1, H), jnp.float32),
        "pool_w": norm(keys[3], (H, H)).astype(jnp.bfloat16),
        "pool_b": jnp.zeros((1, H), jnp.float32),
        "layers": [],
    }
    for li in range(n_layers):
        lk = jax.random.split(keys[4 + li], 4)
        w_qkv = norm(lk[0], (H, 3 * H))
        # Fold 1/sqrt(head_dim) into the Q projection (and its bias, here zeros)
        # so the attention kernel never multiplies by the scale.
        w_qkv = w_qkv.at[:, :H].multiply(q_scale)
        params["layers"].append({
            "w_qkv": w_qkv.astype(jnp.bfloat16),
            "b_qkv": jnp.zeros((1, 3 * H), jnp.float32),
            "wo": norm(lk[1], (H, H)).astype(jnp.bfloat16),
            "bo": jnp.zeros((1, H), jnp.float32),
            "ln1_g": jnp.ones((1, H), jnp.float32),
            "ln1_b": jnp.zeros((1, H), jnp.float32),
            "w1": norm(lk[2], (H, inter)).astype(jnp.bfloat16),
            "b1": jnp.zeros((1, inter), jnp.float32),
            "w2": norm(lk[3], (inter, H)).astype(jnp.bfloat16),
            "b2": jnp.zeros((1, H), jnp.float32),
            "ln2_g": jnp.ones((1, H), jnp.float32),
            "ln2_b": jnp.zeros((1, H), jnp.float32),
        })
    return params


# ---------------------------------------------------------------------------
# BigModel.forward equivalent: returns the BERT pooler_output.
# ---------------------------------------------------------------------------

def big_model_forward(params, tok, att, n_heads):
    B = tok.shape[0]
    H = params["word_emb"].shape[1]
    d = H // n_heads

    # Pad the sequence so B*S tiles cleanly (padded keys are masked out and only
    # the position-0 [CLS] row feeds the pooler).
    tok, att, S = _pad_seq(tok, att)

    # BigModel.forward: token_type_ids = zeros_like(tok) (device move is a no-op);
    # with all-zero types the type embedding collapses to a single broadcast row.
    type_row = params["type_emb"][0:1]

    # Word-embedding gather stays in plain JAX; adds + LayerNorm fused in Pallas.
    word = jnp.take(params["word_emb"], tok, axis=0)                 # (B, S, H)
    x = embed_layernorm(word, params["pos_emb"][:S], type_row,
                        params["emb_ln_g"], params["emb_ln_b"])      # bf16
    x = x.reshape(B * S, H)

    # Extended attention mask: (1 - att) * -10000, broadcast over heads/queries.
    amask = ((1.0 - att.astype(jnp.float32)) * -10000.0).reshape(B, 1, S)

    for p in params["layers"]:
        qkv = dense(x, p["w_qkv"], p["b_qkv"])                       # (B*S, 3H)
        qkv = qkv.reshape(B, S, 3, n_heads, d)
        q, k, v = (jnp.transpose(qkv[:, :, i], (0, 2, 1, 3)) for i in range(3))
        ctx = attention(q, k, v, amask)                              # (B, nH, S, d)
        ctx = jnp.transpose(ctx, (0, 2, 1, 3)).reshape(B * S, H)
        x = dense_res_ln(ctx, p["wo"], p["bo"], x,
                         p["ln1_g"], p["ln1_b"])                     # attn out + LN
        ff = dense(x, p["w1"], p["b1"], activation="gelu")           # FFN up + GELU
        x = dense_res_ln(ff, p["w2"], p["b2"], x, p["ln2_g"], p["ln2_b"])

    cls = x.reshape(B, S, H)[:, 0, :]                                # [CLS] token
    pooled = dense(cls, params["pool_w"], params["pool_b"],
                   activation="tanh", out_dtype=jnp.float32)
    return pooled                                                    # 'pooler_output'


# ---------------------------------------------------------------------------

if __name__ == "__main__":
    B, S = 2, 8            # batch, sequence length
    H = 32                 # hidden size
    N_HEADS = 4
    N_LAYERS = 2
    INTER = 64             # FFN intermediate size
    VOCAB = 30
    MAX_POS = 16

    key = jax.random.PRNGKey(0)
    k_param, k_tok = jax.random.split(key)

    params = init_params(k_param, VOCAB, MAX_POS, H, N_LAYERS, INTER, N_HEADS)

    tok = jax.random.randint(k_tok, (B, S), 0, VOCAB, dtype=jnp.int32)
    att = jnp.array([[1, 1, 1, 1, 1, 1, 1, 1],
                     [1, 1, 1, 1, 1, 0, 0, 0]], dtype=jnp.int32)

    fwd = jax.jit(functools.partial(big_model_forward, n_heads=N_HEADS))
    pooled = jax.block_until_ready(fwd(params, tok, att))
    assert pooled.shape == (B, H) and pooled.dtype == jnp.float32
    assert bool(jnp.all(jnp.isfinite(pooled)))
    print("KERNEL_OK")
</pallas_src>

<mosaic_0001>
module attributes {stable_mosaic.version = 11 : i64} {
  func.func @_embed_ln_kernel(%arg0: i32, %arg1: i32, %arg2: memref<1x8x32xf32, #tpu.memory_space<vmem>>, %arg3: memref<8x32xf32, #tpu.memory_space<vmem>>, %arg4: memref<1x32xf32, #tpu.memory_space<vmem>>, %arg5: memref<1x32xf32, #tpu.memory_space<vmem>>, %arg6: memref<1x32xf32, #tpu.memory_space<vmem>>, %arg7: memref<1x8x32xbf16, #tpu.memory_space<vmem>>) attributes {dimension_semantics = [#tpu.dimension_semantics<parallel>, #tpu.dimension_semantics<parallel>], iteration_bounds = array<i64: 2, 1>, scalar_prefetch = 0 : i64, scratch_operands = 0 : i64, tpu.core_type = #tpu.core_type<tc>, window_params = [{transform_indices = @transform_0, window_bounds = array<i64: 1, 8, 32>}, {transform_indices = @transform_1, window_bounds = array<i64: 8, 32>}, {pipeline_mode = #tpu.pipeline_mode<synchronous>, transform_indices = @transform_2, window_bounds = array<i64: 1, 32>}, {pipeline_mode = #tpu.pipeline_mode<synchronous>, transform_indices = @transform_3, window_bounds = array<i64: 1, 32>}, {pipeline_mode = #tpu.pipeline_mode<synchronous>, transform_indices = @transform_4, window_bounds = array<i64: 1, 32>}, {transform_indices = @transform_5, window_bounds = array<i64: 1, 8, 32>}]} {
    %c0 = arith.constant 0 : index
    %c0_0 = arith.constant 0 : index
    %c0_1 = arith.constant 0 : index
    %0 = vector.load %arg2[%c0, %c0_0, %c0_1] : memref<1x8x32xf32, #tpu.memory_space<vmem>>, vector<1x8x32xf32>
    %1 = vector.shape_cast %0 : vector<1x8x32xf32> to vector<8x32xf32>
    %c0_2 = arith.constant 0 : index
    %c0_3 = arith.constant 0 : index
    %2 = vector.load %arg3[%c0_2, %c0_3] : memref<8x32xf32, #tpu.memory_space<vmem>>, vector<8x32xf32>
    %3 = arith.addf %1, %2 : vector<8x32xf32>
    %c0_4 = arith.constant 0 : index
    %c0_5 = arith.constant 0 : index
    %4 = vector.load %arg4[%c0_4, %c0_5] : memref<1x32xf32, #tpu.memory_space<vmem>>, vector<1x32xf32>
    %5 = vector.broadcast %4 : vector<1x32xf32> to vector<8x32xf32>
    %6 = arith.addf %3, %5 : vector<8x32xf32>
    %cst = arith.constant dense<0.000000e+00> : vector<8xf32>
    %7 = vector.multi_reduction <add>, %6, %cst [1] : vector<8x32xf32> to vector<8xf32>
    %8 = vector.shape_cast %7 : vector<8xf32> to vector<8x1xf32>
    %cst_6 = arith.constant 3.200000e+01 : f32
    %9 = vector.broadcast %cst_6 : f32 to vector<8x1xf32>
    %10 = arith.divf %8, %9 : vector<8x1xf32>
    %11 = vector.broadcast %10 : vector<8x1xf32> to vector<8x32xf32>
    %12 = arith.subf %6, %11 : vector<8x32xf32>
    %13 = arith.mulf %12, %12 : vector<8x32xf32>
    %cst_7 = arith.constant dense<0.000000e+00> : vector<8xf32>
    %14 = vector.multi_reduction <add>, %13, %cst_7 [1] : vector<8x32xf32> to vector<8xf32>
    %15 = vector.shape_cast %14 : vector<8xf32> to vector<8x1xf32>
    %cst_8 = arith.constant 3.200000e+01 : f32
    %16 = vector.broadcast %cst_8 : f32 to vector<8x1xf32>
    %17 = arith.divf %15, %16 : vector<8x1xf32>
    %18 = vector.broadcast %10 : vector<8x1xf32> to vector<8x32xf32>
    %19 = arith.subf %6, %18 : vector<8x32xf32>
    %cst_9 = arith.constant 9.99999996E-13 : f32
    %20 = vector.broadcast %cst_9 : f32 to vector<8x1xf32>
    %21 = arith.addf %17, %20 : vector<8x1xf32>
    %22 = math.rsqrt %21 : vector<8x1xf32>
    %23 = vector.broadcast %22 : vector<8x1xf32> to vector<8x32xf32>
    %24 = arith.mulf %19, %23 : vector<8x32xf32>
    %c0_10 = arith.constant 0 : index
    %c0_11 = arith.constant 0 : index
    %25 = vector.load %arg5[%c0_10, %c0_11] : memref<1x32xf32, #tpu.memory_space<vmem>>, vector<1x32xf32>
    %26 = vector.broadcast %25 : vector<1x32xf32> to vector<8x32xf32>
    %27 = arith.mulf %24, %26 : vector<8x32xf32>
    %c0_12 = arith.constant 0 : index
    %c0_13 = arith.constant 0 : index
    %28 = vector.load %arg6[%c0_12, %c0_13] : memref<1x32xf32, #tpu.memory_space<vmem>>, vector<1x32xf32>
    %29 = vector.broadcast %28 : vector<1x32xf32> to vector<8x32xf32>
    %30 = arith.addf %27, %29 : vector<8x32xf32>
    %31 = arith.truncf %30 : vector<8x32xf32> to vector<8x32xbf16>
    %c0_14 = arith.constant 0 : index
    %c0_15 = arith.constant 0 : index
    %c0_16 = arith.constant 0 : index
    %32 = vector.load %arg7[%c0_14, %c0_15, %c0_16] : memref<1x8x32xbf16, #tpu.memory_space<vmem>>, vector<1x8x32xbf16>
    %33 = vector.shape_cast %32 : vector<1x8x32xbf16> to vector<8x32xbf16>
    %34 = vector.shape_cast %31 : vector<8x32xbf16> to vector<1x8x32xbf16>
    tpu.vector_store %arg7[%c0_14, %c0_15, %c0_16], %34 {strides = array<i32>} : memref<1x8x32xbf16, #tpu.memory_space<vmem>>, vector<1x8x32xbf16>,
    return
  }
  func.func @transform_0(%arg0: i32, %arg1: i32) -> (i32, i32, i32) {
    %c0_i32 = arith.constant 0 : i32
    %c0_i32_0 = arith.constant 0 : i32
    return %arg0, %arg1, %c0_i32 : i32, i32, i32
  }
  func.func @transform_1(%arg0: i32, %arg1: i32) -> (i32, i32) {
    %c0_i32 = arith.constant 0 : i32
    %c0_i32_0 = arith.constant 0 : i32
    return %arg1, %c0_i32 : i32, i32
  }
  func.func @transform_2(%arg0: i32, %arg1: i32) -> (i32, i32) {
    %c0_i32 = arith.constant 0 : i32
    %c0_i32_0 = arith.constant 0 : i32
    %c0_i32_1 = arith.constant 0 : i32
    return %c0_i32, %c0_i32_0 : i32, i32
  }
  func.func @transform_3(%arg0: i32, %arg1: i32) -> (i32, i32) {
    %c0_i32 = arith.constant 0 : i32
    %c0_i32_0 = arith.constant 0 : i32
    %c0_i32_1 = arith.constant 0 : i32
    return %c0_i32, %c0_i32_0 : i32, i32
  }
  func.func @transform_4(%arg0: i32, %arg1: i32) -> (i32, i32) {
    %c0_i32 = arith.constant 0 : i32
    %c0_i32_0 = arith.constant 0 : i32
    %c0_i32_1 = arith.constant 0 : i32
    return %c0_i32, %c0_i32_0 : i32, i32
  }
  func.func @transform_5(%arg0: i32, %arg1: i32) -> (i32, i32, i32) {
    %c0_i32 = arith.constant 0 : i32
    %c0_i32_0 = arith.constant 0 : i32
    return %arg0, %arg1, %c0_i32 : i32, i32, i32
  }
}

module attributes {stable_mosaic.version = 11 : i64} {
  func.func @_dense_kernel(%arg0: i32, %arg1: i32, %arg2: memref<16x32xbf16, #tpu.memory_space<vmem>>, %arg3: memref<32x96xbf16, #tpu.memory_space<vmem>>, %arg4: memref<1x96xf32, #tpu.memory_space<vmem>>, %arg5: memref<16x96xbf16, #tpu.memory_space<vmem>>) attributes {dimension_semantics = [#tpu.dimension_semantics<parallel>, #tpu.dimension_semantics<parallel>], iteration_bounds = array<i64: 1, 1>, scalar_prefetch = 0 : i64, scratch_operands = 0 : i64, tpu.core_type = #tpu.core_type<tc>, window_params = [{transform_indices = @transform_0, window_bounds = array<i64: 16, 32>}, {transform_indices = @transform_1, window_bounds = array<i64: 32, 96>}, {transform_indices = @transform_2, window_bounds = array<i64: 1, 96>}, {transform_indices = @transform_3, window_bounds = array<i64: 16, 96>}]} {
    %c0 = arith.constant 0 : index
    %c0_0 = arith.constant 0 : index
    %0 = vector.load %arg2[%c0, %c0_0] : memref<16x32xbf16, #tpu.memory_space<vmem>>, vector<16x32xbf16>
    %c0_1 = arith.constant 0 : index
    %c0_2 = arith.constant 0 : index
    %1 = vector.load %arg3[%c0_1, %c0_2] : memref<32x96xbf16, #tpu.memory_space<vmem>>, vector<32x96xbf16>
    %cst = arith.constant dense<0.000000e+00> : vector<16x96xf32>
    %2 = tpu.matmul %0, %1, %cst {dimension_numbers = #tpu.dot_dimension_numbers<[1], [0], [0], [1], [0, 0, 1, 1], [], []>} : vector<16x32xbf16>, vector<32x96xbf16>, vector<16x96xf32> -> vector<16x96xf32>
    %c0_3 = arith.constant 0 : index
    %c0_4 = arith.constant 0 : index
    %3 = vector.load %arg4[%c0_3, %c0_4] : memref<1x96xf32, #tpu.memory_space<vmem>>, vector<1x96xf32>
    %4 = vector.broadcast %3 : vector<1x96xf32> to vector<16x96xf32>
    %5 = arith.addf %2, %4 : vector<16x96xf32>
    %6 = arith.truncf %5 : vector<16x96xf32> to vector<16x96xbf16>
    %c0_5 = arith.constant 0 : index
    %c0_6 = arith.constant 0 : index
    %7 = vector.load %arg5[%c0_5, %c0_6] : memref<16x96xbf16, #tpu.memory_space<vmem>>, vector<16x96xbf16>
    tpu.vector_store %arg5[%c0_5, %c0_6], %6 {strides = array<i32>} : memref<16x96xbf16, #tpu.memory_space<vmem>>, vector<16x96xbf16>,
    return
  }
  func.func @transform_0(%arg0: i32, %arg1: i32) -> (i32, i32) {
    %c0_i32 = arith.constant 0 : i32
    %c0_i32_0 = arith.constant 0 : i32
    return %arg0, %c0_i32 : i32, i32
  }
  func.func @transform_1(%arg0: i32, %arg1: i32) -> (i32, i32) {
    %c0_i32 = arith.constant 0 : i32
    %c0_i32_0 = arith.constant 0 : i32
    return %c0_i32, %arg1 : i32, i32
  }
  func.func @transform_2(%arg0: i32, %arg1: i32) -> (i32, i32) {
    %c0_i32 = arith.constant 0 : i32
    %c0_i32_0 = arith.constant 0 : i32
    return %c0_i32, %arg1 : i32, i32
  }
  func.func @transform_3(%arg0: i32, %arg1: i32) -> (i32, i32) {
    %c0_i32 = arith.constant 0 : i32
    return %arg0, %arg1 : i32, i32
  }
}

module attributes {stable_mosaic.version = 11 : i64} {
  func.func @_attention_kernel(%arg0: i32, %arg1: i32, %arg2: memref<1x1x8x8xbf16, #tpu.memory_space<vmem>>, %arg3: memref<1x1x8x8xbf16, #tpu.memory_space<vmem>>, %arg4: memref<1x1x8x8xbf16, #tpu.memory_space<vmem>>, %arg5: memref<1x1x8xf32, #tpu.memory_space<vmem>>, %arg6: memref<1x1x8x8xbf16, #tpu.memory_space<vmem>>) attributes {dimension_semantics = [#tpu.dimension_semantics<parallel>, #tpu.dimension_semantics<parallel>], iteration_bounds = array<i64: 2, 4>, scalar_prefetch = 0 : i64, scratch_operands = 0 : i64, tpu.core_type = #tpu.core_type<tc>, window_params = [{transform_indices = @transform_0, window_bounds = array<i64: 1, 1, 8, 8>}, {transform_indices = @transform_1, window_bounds = array<i64: 1, 1, 8, 8>}, {transform_indices = @transform_2, window_bounds = array<i64: 1, 1, 8, 8>}, {transform_indices = @transform_3, window_bounds = array<i64: 1, 1, 8>}, {transform_indices = @transform_4, window_bounds = array<i64: 1, 1, 8, 8>}]} {
    %c0 = arith.constant 0 : index
    %c0_0 = arith.constant 0 : index
    %c0_1 = arith.constant 0 : index
    %c0_2 = arith.constant 0 : index
    %0 = vector.load %arg2[%c0, %c0_0, %c0_1, %c0_2] : memref<1x1x8x8xbf16, #tpu.memory_space<vmem>>, vector<1x1x8x8xbf16>
    %1 = vector.shape_cast %0 : vector<1x1x8x8xbf16> to vector<8x8xbf16>
    %c0_3 = arith.constant 0 : index
    %c0_4 = arith.constant 0 : index
    %c0_5 = arith.constant 0 : index
    %c0_6 = arith.constant 0 : index
    %2 = vector.load %arg3[%c0_3, %c0_4, %c0_5, %c0_6] : memref<1x1x8x8xbf16, #tpu.memory_space<vmem>>, vector<1x1x8x8xbf16>
    %3 = vector.shape_cast %2 : vector<1x1x8x8xbf16> to vector<8x8xbf16>
    %c0_7 = arith.constant 0 : index
    %c0_8 = arith.constant 0 : index
    %c0_9 = arith.constant 0 : index
    %c0_10 = arith.constant 0 : index
    %4 = vector.load %arg4[%c0_7, %c0_8, %c0_9, %c0_10] : memref<1x1x8x8xbf16, #tpu.memory_space<vmem>>, vector<1x1x8x8xbf16>
    %5 = vector.shape_cast %4 : vector<1x1x8x8xbf16> to vector<8x8xbf16>
    %cst = arith.constant dense<0.000000e+00> : vector<8x8xf32>
    %6 = tpu.matmul %1, %3, %cst {dimension_numbers = #tpu.dot_dimension_numbers<[1], [1], [0], [0], [0, 0, 1, 0], [], []>} : vector<8x8xbf16>, vector<8x8xbf16>, vector<8x8xf32> -> vector<8x8xf32>
    %c0_11 = arith.constant 0 : index
    %c0_12 = arith.constant 0 : index
    %c0_13 = arith.constant 0 : index
    %7 = vector.load %arg5[%c0_11, %c0_12, %c0_13] : memref<1x1x8xf32, #tpu.memory_space<vmem>>, vector<1x1x8xf32>
    %8 = vector.shape_cast %7 : vector<1x1x8xf32> to vector<1x8xf32>
    %9 = vector.broadcast %8 : vector<1x8xf32> to vector<8x8xf32>
    %10 = arith.addf %6, %9 : vector<8x8xf32>
    %cst_14 = arith.constant dense<0xFF800000> : vector<8xf32>
    %11 = vector.multi_reduction <maximumf>, %10, %cst_14 [1] : vector<8x8xf32> to vector<8xf32>
    %12 = vector.shape_cast %11 : vector<8xf32> to vector<8x1xf32>
    %13 = vector.broadcast %12 : vector<8x1xf32> to vector<8x8xf32>
    %14 = arith.subf %10, %13 : vector<8x8xf32>
    %15 = math.exp %14 : vector<8x8xf32>
    %cst_15 = arith.constant dense<0.000000e+00> : vector<8xf32>
    %16 = vector.multi_reduction <add>, %15, %cst_15 [1] : vector<8x8xf32> to vector<8xf32>
    %17 = vector.shape_cast %16 : vector<8xf32> to vector<8x1xf32>
    %18 = tpu.reciprocal %17 : vector<8x1xf32> -> vector<8x1xf32>
    %19 = vector.broadcast %18 : vector<8x1xf32> to vector<8x8xf32>
    %20 = arith.mulf %15, %19 : vector<8x8xf32>
    %21 = arith.truncf %20 : vector<8x8xf32> to vector<8x8xbf16>
    %cst_16 = arith.constant dense<0.000000e+00> : vector<8x8xf32>
    %22 = tpu.matmul %21, %5, %cst_16 {dimension_numbers = #tpu.dot_dimension_numbers<[1], [0], [0], [1], [0, 0, 1, 1], [], []>} : vector<8x8xbf16>, vector<8x8xbf16>, vector<8x8xf32> -> vector<8x8xf32>
    %23 = arith.truncf %22 : vector<8x8xf32> to vector<8x8xbf16>
    %c0_17 = arith.constant 0 : index
    %c0_18 = arith.constant 0 : index
    %c0_19 = arith.constant 0 : index
    %c0_20 = arith.constant 0 : index
    %24 = vector.load %arg6[%c0_17, %c0_18, %c0_19, %c0_20] : memref<1x1x8x8xbf16, #tpu.memory_space<vmem>>, vector<1x1x8x8xbf16>
    %25 = vector.shape_cast %24 : vector<1x1x8x8xbf16> to vector<8x8xbf16>
    %26 = vector.shape_cast %23 : vector<8x8xbf16> to vector<1x1x8x8xbf16>
    tpu.vector_store %arg6[%c0_17, %c0_18, %c0_19, %c0_20], %26 {strides = array<i32>} : memref<1x1x8x8xbf16, #tpu.memory_space<vmem>>, vector<1x1x8x8xbf16>,
    return
  }
  func.func @transform_0(%arg0: i32, %arg1: i32) -> (i32, i32, i32, i32) {
    %c0_i32 = arith.constant 0 : i32
    %c0_i32_0 = arith.constant 0 : i32
    %c0_i32_1 = arith.constant 0 : i32
    return %arg0, %arg1, %c0_i32, %c0_i32_0 : i32, i32, i32, i32
  }
  func.func @transform_1(%arg0: i32, %arg1: i32) -> (i32, i32, i32, i32) {
    %c0_i32 = arith.constant 0 : i32
    %c0_i32_0 = arith.constant 0 : i32
    %c0_i32_1 = arith.constant 0 : i32
    return %arg0, %arg1, %c0_i32, %c0_i32_0 : i32, i32, i32, i32
  }
  func.func @transform_2(%arg0: i32, %arg1: i32) -> (i32, i32, i32, i32) {
    %c0_i32 = arith.constant 0 : i32
    %c0_i32_0 = arith.constant 0 : i32
    %c0_i32_1 = arith.constant 0 : i32
    return %arg0, %arg1, %c0_i32, %c0_i32_0 : i32, i32, i32, i32
  }
  func.func @transform_3(%arg0: i32, %arg1: i32) -> (i32, i32, i32) {
    %c0_i32 = arith.constant 0 : i32
    %c0_i32_0 = arith.constant 0 : i32
    %c0_i32_1 = arith.constant 0 : i32
    return %arg0, %c0_i32, %c0_i32_0 : i32, i32, i32
  }
  func.func @transform_4(%arg0: i32, %arg1: i32) -> (i32, i32, i32, i32) {
    %c0_i32 = arith.constant 0 : i32
    %c0_i32_0 = arith.constant 0 : i32
    %c0_i32_1 = arith.constant 0 : i32
    return %arg0, %arg1, %c0_i32, %c0_i32_0 : i32, i32, i32, i32
  }
}

module attributes {stable_mosaic.version = 11 : i64} {
  func.func @_dense_res_ln_kernel(%arg0: i32, %arg1: memref<16x32xbf16, #tpu.memory_space<vmem>>, %arg2: memref<32x32xbf16, #tpu.memory_space<vmem>>, %arg3: memref<1x32xf32, #tpu.memory_space<vmem>>, %arg4: memref<16x32xbf16, #tpu.memory_space<vmem>>, %arg5: memref<1x32xf32, #tpu.memory_space<vmem>>, %arg6: memref<1x32xf32, #tpu.memory_space<vmem>>, %arg7: memref<16x32xbf16, #tpu.memory_space<vmem>>) attributes {dimension_semantics = [#tpu.dimension_semantics<parallel>], iteration_bounds = array<i64: 1>, scalar_prefetch = 0 : i64, scratch_operands = 0 : i64, tpu.core_type = #tpu.core_type<tc>, window_params = [{transform_indices = @transform_0, window_bounds = array<i64: 16, 32>}, {pipeline_mode = #tpu.pipeline_mode<synchronous>, transform_indices = @transform_1, window_bounds = array<i64: 32, 32>}, {pipeline_mode = #tpu.pipeline_mode<synchronous>, transform_indices = @transform_2, window_bounds = array<i64: 1, 32>}, {transform_indices = @transform_3, window_bounds = array<i64: 16, 32>}, {pipeline_mode = #tpu.pipeline_mode<synchronous>, transform_indices = @transform_4, window_bounds = array<i64: 1, 32>}, {pipeline_mode = #tpu.pipeline_mode<synchronous>, transform_indices = @transform_5, window_bounds = array<i64: 1, 32>}, {transform_indices = @transform_6, window_bounds = array<i64: 16, 32>}]} {
    %c0 = arith.constant 0 : index
    %c0_0 = arith.constant 0 : index
    %0 = vector.load %arg1[%c0, %c0_0] : memref<16x32xbf16, #tpu.memory_space<vmem>>, vector<16x32xbf16>
    %c0_1 = arith.constant 0 : index
    %c0_2 = arith.constant 0 : index
    %1 = vector.load %arg2[%c0_1, %c0_2] : memref<32x32xbf16, #tpu.memory_space<vmem>>, vector<32x32xbf16>
    %cst = arith.constant dense<0.000000e+00> : vector<16x32xf32>
    %2 = tpu.matmul %0, %1, %cst {dimension_numbers = #tpu.dot_dimension_numbers<[1], [0], [0], [1], [0, 0, 1, 1], [], []>} : vector<16x32xbf16>, vector<32x32xbf16>, vector<16x32xf32> -> vector<16x32xf32>
    %c0_3 = arith.constant 0 : index
    %c0_4 = arith.constant 0 : index
    %3 = vector.load %arg3[%c0_3, %c0_4] : memref<1x32xf32, #tpu.memory_space<vmem>>, vector<1x32xf32>
    %4 = vector.broadcast %3 : vector<1x32xf32> to vector<16x32xf32>
    %5 = arith.addf %2, %4 : vector<16x32xf32>
    %c0_5 = arith.constant 0 : index
    %c0_6 = arith.constant 0 : index
    %6 = vector.load %arg4[%c0_5, %c0_6] : memref<16x32xbf16, #tpu.memory_space<vmem>>, vector<16x32xbf16>
    %7 = arith.extf %6 : vector<16x32xbf16> to vector<16x32xf32>
    %8 = arith.addf %5, %7 : vector<16x32xf32>
    %cst_7 = arith.constant dense<0.000000e+00> : vector<16xf32>
    %9 = vector.multi_reduction <add>, %8, %cst_7 [1] : vector<16x32xf32> to vector<16xf32>
    %10 = vector.shape_cast %9 : vector<16xf32> to vector<16x1xf32>
    %cst_8 = arith.constant 3.200000e+01 : f32
    %11 = vector.broadcast %cst_8 : f32 to vector<16x1xf32>
    %12 = arith.divf %10, %11 : vector<16x1xf32>
    %13 = vector.broadcast %12 : vector<16x1xf32> to vector<16x32xf32>
    %14 = arith.subf %8, %13 : vector<16x32xf32>
    %15 = arith.mulf %14, %14 : vector<16x32xf32>
    %cst_9 = arith.constant dense<0.000000e+00> : vector<16xf32>
    %16 = vector.multi_reduction <add>, %15, %cst_9 [1] : vector<16x32xf32> to vector<16xf32>
    %17 = vector.shape_cast %16 : vector<16xf32> to vector<16x1xf32>
    %cst_10 = arith.constant 3.200000e+01 : f32
    %18 = vector.broadcast %cst_10 : f32 to vector<16x1xf32>
    %19 = arith.divf %17, %18 : vector<16x1xf32>
    %20 = vector.broadcast %12 : vector<16x1xf32> to vector<16x32xf32>
    %21 = arith.subf %8, %20 : vector<16x32xf32>
    %cst_11 = arith.constant 9.99999996E-13 : f32
    %22 = vector.broadcast %cst_11 : f32 to vector<16x1xf32>
    %23 = arith.addf %19, %22 : vector<16x1xf32>
    %24 = math.rsqrt %23 : vector<16x1xf32>
    %25 = vector.broadcast %24 : vector<16x1xf32> to vector<16x32xf32>
    %26 = arith.mulf %21, %25 : vector<16x32xf32>
    %c0_12 = arith.constant 0 : index
    %c0_13 = arith.constant 0 : index
    %27 = vector.load %arg5[%c0_12, %c0_13] : memref<1x32xf32, #tpu.memory_space<vmem>>, vector<1x32xf32>
    %28 = vector.broadcast %27 : vector<1x32xf32> to vector<16x32xf32>
    %29 = arith.mulf %26, %28 : vector<16x32xf32>
    %c0_14 = arith.constant 0 : index
    %c0_15 = arith.constant 0 : index
    %30 = vector.load %arg6[%c0_14, %c0_15] : memref<1x32xf32, #tpu.memory_space<vmem>>, vector<1x32xf32>
    %31 = vector.broadcast %30 : vector<1x32xf32> to vector<16x32xf32>
    %32 = arith.addf %29, %31 : vector<16x32xf32>
    %33 = arith.truncf %32 : vector<16x32xf32> to vector<16x32xbf16>
    %c0_16 = arith.constant 0 : index
    %c0_17 = arith.constant 0 : index
    %34 = vector.load %arg7[%c0_16, %c0_17] : memref<16x32xbf16, #tpu.memory_space<vmem>>, vector<16x32xbf16>
    tpu.vector_store %arg7[%c0_16, %c0_17], %33 {strides = array<i32>} : memref<16x32xbf16, #tpu.memory_space<vmem>>, vector<16x32xbf16>,
    return
  }
  func.func @transform_0(%arg0: i32) -> (i32, i32) {
    %c0_i32 = arith.constant 0 : i32
    %c0_i32_0 = arith.constant 0 : i32
    return %arg0, %c0_i32 : i32, i32
  }
  func.func @transform_1(%arg0: i32) -> (i32, i32) {
    %c0_i32 = arith.constant 0 : i32
    %c0_i32_0 = arith.constant 0 : i32
    %c0_i32_1 = arith.constant 0 : i32
    return %c0_i32, %c0_i32_0 : i32, i32
  }
  func.func @transform_2(%arg0: i32) -> (i32, i32) {
    %c0_i32 = arith.constant 0 : i32
    %c0_i32_0 = arith.constant 0 : i32
    %c0_i32_1 = arith.constant 0 : i32
    return %c0_i32, %c0_i32_0 : i32, i32
  }
  func.func @transform_3(%arg0: i32) -> (i32, i32) {
    %c0_i32 = arith.constant 0 : i32
    %c0_i32_0 = arith.constant 0 : i32
    return %arg0, %c0_i32 : i32, i32
  }
  func.func @transform_4(%arg0: i32) -> (i32, i32) {
    %c0_i32 = arith.constant 0 : i32
    %c0_i32_0 = arith.constant 0 : i32
    %c0_i32_1 = arith.constant 0 : i32
    return %c0_i32, %c0_i32_0 : i32, i32
  }
  func.func @transform_5(%arg0: i32) -> (i32, i32) {
    %c0_i32 = arith.constant 0 : i32
    %c0_i32_0 = arith.constant 0 : i32
    %c0_i32_1 = arith.constant 0 : i32
    return %c0_i32, %c0_i32_0 : i32, i32
  }
  func.func @transform_6(%arg0: i32) -> (i32, i32) {
    %c0_i32 = arith.constant 0 : i32
    %c0_i32_0 = arith.constant 0 : i32
    return %arg0, %c0_i32 : i32, i32
  }
}

module attributes {stable_mosaic.version = 11 : i64} {
  func.func @_dense_kernel(%arg0: i32, %arg1: i32, %arg2: memref<16x32xbf16, #tpu.memory_space<vmem>>, %arg3: memref<32x64xbf16, #tpu.memory_space<vmem>>, %arg4: memref<1x64xf32, #tpu.memory_space<vmem>>, %arg5: memref<16x64xbf16, #tpu.memory_space<vmem>>) attributes {dimension_semantics = [#tpu.dimension_semantics<parallel>, #tpu.dimension_semantics<parallel>], iteration_bounds = array<i64: 1, 1>, scalar_prefetch = 0 : i64, scratch_operands = 0 : i64, tpu.core_type = #tpu.core_type<tc>, window_params = [{transform_indices = @transform_0, window_bounds = array<i64: 16, 32>}, {transform_indices = @transform_1, window_bounds = array<i64: 32, 64>}, {transform_indices = @transform_2, window_bounds = array<i64: 1, 64>}, {transform_indices = @transform_3, window_bounds = array<i64: 16, 64>}]} {
    %c0 = arith.constant 0 : index
    %c0_0 = arith.constant 0 : index
    %0 = vector.load %arg2[%c0, %c0_0] : memref<16x32xbf16, #tpu.memory_space<vmem>>, vector<16x32xbf16>
    %c0_1 = arith.constant 0 : index
    %c0_2 = arith.constant 0 : index
    %1 = vector.load %arg3[%c0_1, %c0_2] : memref<32x64xbf16, #tpu.memory_space<vmem>>, vector<32x64xbf16>
    %cst = arith.constant dense<0.000000e+00> : vector<16x64xf32>
    %2 = tpu.matmul %0, %1, %cst {dimension_numbers = #tpu.dot_dimension_numbers<[1], [0], [0], [1], [0, 0, 1, 1], [], []>} : vector<16x32xbf16>, vector<32x64xbf16>, vector<16x64xf32> -> vector<16x64xf32>
    %c0_3 = arith.constant 0 : index
    %c0_4 = arith.constant 0 : index
    %3 = vector.load %arg4[%c0_3, %c0_4] : memref<1x64xf32, #tpu.memory_space<vmem>>, vector<1x64xf32>
    %4 = vector.broadcast %3 : vector<1x64xf32> to vector<16x64xf32>
    %5 = arith.addf %2, %4 : vector<16x64xf32>
    %cst_5 = arith.constant 5.000000e-01 : f32
    %6 = vector.broadcast %cst_5 : f32 to vector<16x64xf32>
    %7 = arith.mulf %6, %5 : vector<16x64xf32>
    %cst_6 = arith.constant 4.471500e-02 : f32
    %8 = vector.broadcast %cst_6 : f32 to vector<16x64xf32>
    %9 = arith.mulf %8, %5 : vector<16x64xf32>
    %10 = arith.mulf %9, %5 : vector<16x64xf32>
    %11 = arith.mulf %10, %5 : vector<16x64xf32>
    %12 = arith.addf %5, %11 : vector<16x64xf32>
    %cst_7 = arith.constant 0.797884583 : f32
    %13 = vector.broadcast %cst_7 : f32 to vector<16x64xf32>
    %14 = arith.mulf %13, %12 : vector<16x64xf32>
    %15 = math.tanh %14 : vector<16x64xf32>
    %cst_8 = arith.constant 1.000000e+00 : f32
    %16 = vector.broadcast %cst_8 : f32 to vector<16x64xf32>
    %17 = arith.addf %16, %15 : vector<16x64xf32>
    %18 = arith.mulf %7, %17 : vector<16x64xf32>
    %19 = arith.truncf %18 : vector<16x64xf32> to vector<16x64xbf16>
    %c0_9 = arith.constant 0 : index
    %c0_10 = arith.constant 0 : index
    %20 = vector.load %arg5[%c0_9, %c0_10] : memref<16x64xbf16, #tpu.memory_space<vmem>>, vector<16x64xbf16>
    tpu.vector_store %arg5[%c0_9, %c0_10], %19 {strides = array<i32>} : memref<16x64xbf16, #tpu.memory_space<vmem>>, vector<16x64xbf16>,
    return
  }
  func.func @transform_0(%arg0: i32, %arg1: i32) -> (i32, i32) {
    %c0_i32 = arith.constant 0 : i32
    %c0_i32_0 = arith.constant 0 : i32
    return %arg0, %c0_i32 : i32, i32
  }
  func.func @transform_1(%arg0: i32, %arg1: i32) -> (i32, i32) {
    %c0_i32 = arith.constant 0 : i32
    %c0_i32_0 = arith.constant 0 : i32
    return %c0_i32, %arg1 : i32, i32
  }
  func.func @transform_2(%arg0: i32, %arg1: i32) -> (i32, i32) {
    %c0_i32 = arith.constant 0 : i32
    %c0_i32_0 = arith.constant 0 : i32
    return %c0_i32, %arg1 : i32, i32
  }
  func.func @transform_3(%arg0: i32, %arg1: i32) -> (i32, i32) {
    %c0_i32 = arith.constant 0 : i32
    return %arg0, %arg1 : i32, i32
  }
}

module attributes {stable_mosaic.version = 11 : i64} {
  func.func @_dense_res_ln_kernel(%arg0: i32, %arg1: memref<16x64xbf16, #tpu.memory_space<vmem>>, %arg2: memref<64x32xbf16, #tpu.memory_space<vmem>>, %arg3: memref<1x32xf32, #tpu.memory_space<vmem>>, %arg4: memref<16x32xbf16, #tpu.memory_space<vmem>>, %arg5: memref<1x32xf32, #tpu.memory_space<vmem>>, %arg6: memref<1x32xf32, #tpu.memory_space<vmem>>, %arg7: memref<16x32xbf16, #tpu.memory_space<vmem>>) attributes {dimension_semantics = [#tpu.dimension_semantics<parallel>], iteration_bounds = array<i64: 1>, scalar_prefetch = 0 : i64, scratch_operands = 0 : i64, tpu.core_type = #tpu.core_type<tc>, window_params = [{transform_indices = @transform_0, window_bounds = array<i64: 16, 64>}, {pipeline_mode = #tpu.pipeline_mode<synchronous>, transform_indices = @transform_1, window_bounds = array<i64: 64, 32>}, {pipeline_mode = #tpu.pipeline_mode<synchronous>, transform_indices = @transform_2, window_bounds = array<i64: 1, 32>}, {transform_indices = @transform_3, window_bounds = array<i64: 16, 32>}, {pipeline_mode = #tpu.pipeline_mode<synchronous>, transform_indices = @transform_4, window_bounds = array<i64: 1, 32>}, {pipeline_mode = #tpu.pipeline_mode<synchronous>, transform_indices = @transform_5, window_bounds = array<i64: 1, 32>}, {transform_indices = @transform_6, window_bounds = array<i64: 16, 32>}]} {
    %c0 = arith.constant 0 : index
    %c0_0 = arith.constant 0 : index
    %0 = vector.load %arg1[%c0, %c0_0] : memref<16x64xbf16, #tpu.memory_space<vmem>>, vector<16x64xbf16>
    %c0_1 = arith.constant 0 : index
    %c0_2 = arith.constant 0 : index
    %1 = vector.load %arg2[%c0_1, %c0_2] : memref<64x32xbf16, #tpu.memory_space<vmem>>, vector<64x32xbf16>
    %cst = arith.constant dense<0.000000e+00> : vector<16x32xf32>
    %2 = tpu.matmul %0, %1, %cst {dimension_numbers = #tpu.dot_dimension_numbers<[1], [0], [0], [1], [0, 0, 1, 1], [], []>} : vector<16x64xbf16>, vector<64x32xbf16>, vector<16x32xf32> -> vector<16x32xf32>
    %c0_3 = arith.constant 0 : index
    %c0_4 = arith.constant 0 : index
    %3 = vector.load %arg3[%c0_3, %c0_4] : memref<1x32xf32, #tpu.memory_space<vmem>>, vector<1x32xf32>
    %4 = vector.broadcast %3 : vector<1x32xf32> to vector<16x32xf32>
    %5 = arith.addf %2, %4 : vector<16x32xf32>
    %c0_5 = arith.constant 0 : index
    %c0_6 = arith.constant 0 : index
    %6 = vector.load %arg4[%c0_5, %c0_6] : memref<16x32xbf16, #tpu.memory_space<vmem>>, vector<16x32xbf16>
    %7 = arith.extf %6 : vector<16x32xbf16> to vector<16x32xf32>
    %8 = arith.addf %5, %7 : vector<16x32xf32>
    %cst_7 = arith.constant dense<0.000000e+00> : vector<16xf32>
    %9 = vector.multi_reduction <add>, %8, %cst_7 [1] : vector<16x32xf32> to vector<16xf32>
    %10 = vector.shape_cast %9 : vector<16xf32> to vector<16x1xf32>
    %cst_8 = arith.constant 3.200000e+01 : f32
    %11 = vector.broadcast %cst_8 : f32 to vector<16x1xf32>
    %12 = arith.divf %10, %11 : vector<16x1xf32>
    %13 = vector.broadcast %12 : vector<16x1xf32> to vector<16x32xf32>
    %14 = arith.subf %8, %13 : vector<16x32xf32>
    %15 = arith.mulf %14, %14 : vector<16x32xf32>
    %cst_9 = arith.constant dense<0.000000e+00> : vector<16xf32>
    %16 = vector.multi_reduction <add>, %15, %cst_9 [1] : vector<16x32xf32> to vector<16xf32>
    %17 = vector.shape_cast %16 : vector<16xf32> to vector<16x1xf32>
    %cst_10 = arith.constant 3.200000e+01 : f32
    %18 = vector.broadcast %cst_10 : f32 to vector<16x1xf32>
    %19 = arith.divf %17, %18 : vector<16x1xf32>
    %20 = vector.broadcast %12 : vector<16x1xf32> to vector<16x32xf32>
    %21 = arith.subf %8, %20 : vector<16x32xf32>
    %cst_11 = arith.constant 9.99999996E-13 : f32
    %22 = vector.broadcast %cst_11 : f32 to vector<16x1xf32>
    %23 = arith.addf %19, %22 : vector<16x1xf32>
    %24 = math.rsqrt %23 : vector<16x1xf32>
    %25 = vector.broadcast %24 : vector<16x1xf32> to vector<16x32xf32>
    %26 = arith.mulf %21, %25 : vector<16x32xf32>
    %c0_12 = arith.constant 0 : index
    %c0_13 = arith.constant 0 : index
    %27 = vector.load %arg5[%c0_12, %c0_13] : memref<1x32xf32, #tpu.memory_space<vmem>>, vector<1x32xf32>
    %28 = vector.broadcast %27 : vector<1x32xf32> to vector<16x32xf32>
    %29 = arith.mulf %26, %28 : vector<16x32xf32>
    %c0_14 = arith.constant 0 : index
    %c0_15 = arith.constant 0 : index
    %30 = vector.load %arg6[%c0_14, %c0_15] : memref<1x32xf32, #tpu.memory_space<vmem>>, vector<1x32xf32>
    %31 = vector.broadcast %30 : vector<1x32xf32> to vector<16x32xf32>
    %32 = arith.addf %29, %31 : vector<16x32xf32>
    %33 = arith.truncf %32 : vector<16x32xf32> to vector<16x32xbf16>
    %c0_16 = arith.constant 0 : index
    %c0_17 = arith.constant 0 : index
    %34 = vector.load %arg7[%c0_16, %c0_17] : memref<16x32xbf16, #tpu.memory_space<vmem>>, vector<16x32xbf16>
    tpu.vector_store %arg7[%c0_16, %c0_17], %33 {strides = array<i32>} : memref<16x32xbf16, #tpu.memory_space<vmem>>, vector<16x32xbf16>,
    return
  }
  func.func @transform_0(%arg0: i32) -> (i32, i32) {
    %c0_i32 = arith.constant 0 : i32
    %c0_i32_0 = arith.constant 0 : i32
    return %arg0, %c0_i32 : i32, i32
  }
  func.func @transform_1(%arg0: i32) -> (i32, i32) {
    %c0_i32 = arith.constant 0 : i32
    %c0_i32_0 = arith.constant 0 : i32
    %c0_i32_1 = arith.constant 0 : i32
    return %c0_i32, %c0_i32_0 : i32, i32
  }
  func.func @transform_2(%arg0: i32) -> (i32, i32) {
    %c0_i32 = arith.constant 0 : i32
    %c0_i32_0 = arith.constant 0 : i32
    %c0_i32_1 = arith.constant 0 : i32
    return %c0_i32, %c0_i32_0 : i32, i32
  }
  func.func @transform_3(%arg0: i32) -> (i32, i32) {
    %c0_i32 = arith.constant 0 : i32
    %c0_i32_0 = arith.constant 0 : i32
    return %arg0, %c0_i32 : i32, i32
  }
  func.func @transform_4(%arg0: i32) -> (i32, i32) {
    %c0_i32 = arith.constant 0 : i32
    %c0_i32_0 = arith.constant 0 : i32
    %c0_i32_1 = arith.constant 0 : i32
    return %c0_i32, %c0_i32_0 : i32, i32
  }
  func.func @transform_5(%arg0: i32) -> (i32, i32) {
    %c0_i32 = arith.constant 0 : i32
    %c0_i32_0 = arith.constant 0 : i32
    %c0_i32_1 = arith.constant 0 : i32
    return %c0_i32, %c0_i32_0 : i32, i32
  }
  func.func @transform_6(%arg0: i32) -> (i32, i32) {
    %c0_i32 = arith.constant 0 : i32
    %c0_i32_0 = arith.constant 0 : i32
    return %arg0, %c0_i32 : i32, i32
  }
}

module attributes {stable_mosaic.version = 11 : i64} {
  func.func @_dense_kernel(%arg0: i32, %arg1: i32, %arg2: memref<2x32xbf16, #tpu.memory_space<vmem>>, %arg3: memref<32x32xbf16, #tpu.memory_space<vmem>>, %arg4: memref<1x32xf32, #tpu.memory_space<vmem>>, %arg5: memref<2x32xf32, #tpu.memory_space<vmem>>) attributes {dimension_semantics = [#tpu.dimension_semantics<parallel>, #tpu.dimension_semantics<parallel>], iteration_bounds = array<i64: 1, 1>, scalar_prefetch = 0 : i64, scratch_operands = 0 : i64, tpu.core_type = #tpu.core_type<tc>, window_params = [{transform_indices = @transform_0, window_bounds = array<i64: 2, 32>}, {transform_indices = @transform_1, window_bounds = array<i64: 32, 32>}, {transform_indices = @transform_2, window_bounds = array<i64: 1, 32>}, {transform_indices = @transform_3, window_bounds = array<i64: 2, 32>}]} {
    %c0 = arith.constant 0 : index
    %c0_0 = arith.constant 0 : index
    %0 = vector.load %arg2[%c0, %c0_0] : memref<2x32xbf16, #tpu.memory_space<vmem>>, vector<2x32xbf16>
    %c0_1 = arith.constant 0 : index
    %c0_2 = arith.constant 0 : index
    %1 = vector.load %arg3[%c0_1, %c0_2] : memref<32x32xbf16, #tpu.memory_space<vmem>>, vector<32x32xbf16>
    %cst = arith.constant dense<0.000000e+00> : vector<2x32xf32>
    %2 = tpu.matmul %0, %1, %cst {dimension_numbers = #tpu.dot_dimension_numbers<[1], [0], [0], [1], [0, 0, 1, 1], [], []>} : vector<2x32xbf16>, vector<32x32xbf16>, vector<2x32xf32> -> vector<2x32xf32>
    %c0_3 = arith.constant 0 : index
    %c0_4 = arith.constant 0 : index
    %3 = vector.load %arg4[%c0_3, %c0_4] : memref<1x32xf32, #tpu.memory_space<vmem>>, vector<1x32xf32>
    %4 = vector.broadcast %3 : vector<1x32xf32> to vector<2x32xf32>
    %5 = arith.addf %2, %4 : vector<2x32xf32>
    %6 = math.tanh %5 : vector<2x32xf32>
    %c0_5 = arith.constant 0 : index
    %c0_6 = arith.constant 0 : index
    %7 = vector.load %arg5[%c0_5, %c0_6] : memref<2x32xf32, #tpu.memory_space<vmem>>, vector<2x32xf32>
    tpu.vector_store %arg5[%c0_5, %c0_6], %6 {strides = array<i32>} : memref<2x32xf32, #tpu.memory_space<vmem>>, vector<2x32xf32>,
    return
  }
  func.func @transform_0(%arg0: i32, %arg1: i32) -> (i32, i32) {
    %c0_i32 = arith.constant 0 : i32
    %c0_i32_0 = arith.constant 0 : i32
    return %arg0, %c0_i32 : i32, i32
  }
  func.func @transform_1(%arg0: i32, %arg1: i32) -> (i32, i32) {
    %c0_i32 = arith.constant 0 : i32
    %c0_i32_0 = arith.constant 0 : i32
    return %c0_i32, %arg1 : i32, i32
  }
  func.func @transform_2(%arg0: i32, %arg1: i32) -> (i32, i32) {
    %c0_i32 = arith.constant 0 : i32
    %c0_i32_0 = arith.constant 0 : i32
    return %c0_i32, %arg1 : i32, i32
  }
  func.func @transform_3(%arg0: i32, %arg1: i32) -> (i32, i32) {
    %c0_i32 = arith.constant 0 : i32
    return %arg0, %arg1 : i32, i32
  }
}

</mosaic_0001>

<llo_original>
// kernel: big_model_forward.12
$region0: #{big_model_forward.12}
  #allocation0 [shape = 'u32[]', space=smem, size = 0x4, offset = 0x4, fixed_abs, tag = 'smem constant byte address 0x4 - core index']
  #allocation1 [shape = 'u32[144,128]{1,0:T(1,128)}', space=vmem, size = 0x12000, scoped, tag = 'internal scratch']
  %s0 = inlined_call_operand.vmem [shape: f32[2,8,32], index: 0, kind: input, shape index: {}]
  %s1 = inlined_call_operand.vmem [shape: f32[8,32], index: 1, kind: input, shape index: {}]
  %s2 = inlined_call_operand.vmem [shape: f32[1,32], index: 2, kind: input, shape index: {}]
  %s3 = inlined_call_operand.vmem [shape: f32[1,32], index: 3, kind: input, shape index: {}]
  %s4 = inlined_call_operand.vmem [shape: f32[1,32], index: 4, kind: input, shape index: {}]
  %s5 = inlined_call_operand.vmem [shape: bf16[2,8,32], index: 5, kind: output, shape index: {}]
  %s6 = sld [smem:[#allocation0]]
  $region53: #{big_model_forward.12} parent=0
    _
  %s8 = ssub.s32 1, %s6
  %s9 = scalar_select 0, %s8, %s6
  loop: start=0, step=1, limit=4
  $region2: #{big_model_forward.12} parent=0 // loop_pre_header
    _
  $region3: #{big_model_forward.12} parent=0 // loop_header
    %s11 = sphi 0, %s15
    %p12 = scmp.ge.s32.totalorder %s11, 4
    %s18 = sphi 0, %s30
    %s19 = sphi 0, %s26
    %s20 = sphi 0, %s18
    %s21 = sphi 0, %s19
    %s22 = sphi 0, %s20
    %s23 = sphi 0, %s21
    %s35 = sphi 0, %s37
    %s38 = sphi 0, %s35
    %s39 = sphi 0, %s38
    %s55 = sphi 0, %s39
    %s61 = sphi 0, %s63
    %s64 = sphi 0, %s61
    %s65 = sphi 0, %s64
    %s81 = sphi 0, %s65
    %s85 = sphi 0, %s85
    %s87 = sphi 0, %s85
    %s88 = sphi 0, %s87
    %s102 = sphi 0, %s88
    %s106 = sphi 0, %s106
    %s108 = sphi 0, %s106
    %s109 = sphi 0, %s108
    %s123 = sphi 0, %s109
    %s127 = sphi 0, %s127
    %s129 = sphi 0, %s127
    %s130 = sphi 0, %s129
    %s144 = sphi 0, %s130
    %s152 = sphi 0, %s154
    %s155 = sphi 0, %s152
    %s156 = sphi 0, %s155
    %s172 = sphi 0, %s156
  $region4: #{big_model_forward.12} parent=0 // loop_header_branch
    %14 = sbr.rel (%p12) target = $region8
  $region5: #{big_model_forward.12} parent=0 // loop_body
    %s16 = ssub.s32 %s11, 1
    %s17 = ssub.s32 %s11, 2
    %s24 = sadd.s32 1, %s19
    %p25 = scmp.ge.s32.totalorder %s24, 1
    %s26 = scalar_select %p25, 0, %s24
    %s27 = sadd.s32 1, %s18
    %s28 = scalar_select %p25, %s27, %s18
    %p29 = scmp.ge.s32.totalorder %s28, 2
    %s30 = scalar_select %p29, 0, %s28
    %s31 = ssub.s32 %s18, %s30
    %s32 = ssub.s32 %s19, %s26
    %s33 = sor.u32 %s31, %s32
    %p34 = scmp.eq.s32.totalorder %s33, 0
    %s36 = sadd.s32 %s35, 1
    %s37 = scalar_select %p34, %s35, %s36
    %p40 = pneg %p34
    %p41 = scmp.eq.s32.totalorder %s11, 1
    %p42 = por %p40, %p41
    %p43 = scmp.ne.s32.totalorder %s35, %s38
    %p44 = scmp.eq.s32.totalorder %s11, 0
    %p45 = por %p43, %p44
    %p46 = scmp.ne.s32.totalorder %s35, %s38
    %p47 = scmp.eq.s32.totalorder %s16, 1
    %p48 = por %p46, %p47
    %p49 = scmp.ne.s32.totalorder %s38, %s39
    %p50 = scmp.eq.s32.totalorder %s16, 0
    %p51 = por %p49, %p50
    %p52 = scmp.ne.s32.totalorder %s38, %s39
    %p53 = scmp.eq.s32.totalorder %s17, 1
    %p54 = por %p52, %p53
    %p56 = scmp.ne.s32.totalorder %s39, %s55
    %p57 = scmp.eq.s32.totalorder %s17, 0
    %p58 = por %p56, %p57
    %s59 = ssub.s32 %s19, %s26
    %p60 = scmp.eq.s32.totalorder %s59, 0
    %s62 = sadd.s32 %s61, 1
    %s63 = scalar_select %p60, %s61, %s62
    %p66 = pneg %p60
    %p67 = scmp.eq.s32.totalorder %s11, 1
    %p68 = por %p66, %p67
    %p69 = scmp.ne.s32.totalorder %s61, %s64
    %p70 = scmp.eq.s32.totalorder %s11, 0
    %p71 = por %p69, %p70
    %p72 = scmp.ne.s32.totalorder %s61, %s64
    %p73 = scmp.eq.s32.totalorder %s16, 1
    %p74 = por %p72, %p73
    %p75 = scmp.ne.s32.totalorder %s64, %s65
    %p76 = scmp.eq.s32.totalorder %s16, 0
    %p77 = por %p75, %p76
    %p78 = scmp.ne.s32.totalorder %s64, %s65
    %p79 = scmp.eq.s32.totalorder %s17, 1
    %p80 = por %p78, %p79
    %p82 = scmp.ne.s32.totalorder %s65, %s81
    %p83 = scmp.eq.s32.totalorder %s17, 0
    %p84 = por %p82, %p83
    %s86 = sadd.s32 %s85, 1
    %p89 = scmp.eq.s32.totalorder %s11, 1
    %p90 = scmp.ne.s32.totalorder %s85, %s87
    %p91 = scmp.eq.s32.totalorder %s11, 0
    %p92 = por %p90, %p91
    %p93 = scmp.ne.s32.totalorder %s85, %s87
    %p94 = scmp.eq.s32.totalorder %s16, 1
    %p95 = por %p93, %p94
    %p96 = scmp.ne.s32.totalorder %s87, %s88
    %p97 = scmp.eq.s32.totalorder %s16, 0
    %p98 = por %p96, %p97
    %p99 = scmp.ne.s32.totalorder %s87, %s88
    %p100 = scmp.eq.s32.totalorder %s17, 1
    %p101 = por %p99, %p100
    %p103 = scmp.ne.s32.totalorder %s88, %s102
    %p104 = scmp.eq.s32.totalorder %s17, 0
    %p105 = por %p103, %p104
    %s107 = sadd.s32 %s106, 1
    %p110 = scmp.eq.s32.totalorder %s11, 1
    %p111 = scmp.ne.s32.totalorder %s106, %s108
    %p112 = scmp.eq.s32.totalorder %s11, 0
    %p113 = por %p111, %p112
    %p114 = scmp.ne.s32.totalorder %s106, %s108
    %p115 = scmp.eq.s32.totalorder %s16, 1
    %p116 = por %p114, %p115
    %p117 = scmp.ne.s32.totalorder %s108, %s109
    %p118 = scmp.eq.s32.totalorder %s16, 0
    %p119 = por %p117, %p118
    %p120 = scmp.ne.s32.totalorder %s108, %s109
    %p121 = scmp.eq.s32.totalorder %s17, 1
    %p122 = por %p120, %p121
    %p124 = scmp.ne.s32.totalorder %s109, %s123
    %p125 = scmp.eq.s32.totalorder %s17, 0
    %p126 = por %p124, %p125
    %s128 = sadd.s32 %s127, 1
    %p131 = scmp.eq.s32.totalorder %s11, 1
    %p132 = scmp.ne.s32.totalorder %s127, %s129
    %p133 = scmp.eq.s32.totalorder %s11, 0
    %p134 = por %p132, %p133
    %p135 = scmp.ne.s32.totalorder %s127, %s129
    %p136 = scmp.eq.s32.totalorder %s16, 1
    %p137 = por %p135, %p136
    %p138 = scmp.ne.s32.totalorder %s129, %s130
    %p139 = scmp.eq.s32.totalorder %s16, 0
    %p140 = por %p138, %p139
    %p141 = scmp.ne.s32.totalorder %s129, %s130
    %p142 = scmp.eq.s32.totalorder %s17, 1
    %p143 = por %p141, %p142
    %p145 = scmp.ne.s32.totalorder %s130, %s144
    %p146 = scmp.eq.s32.totalorder %s17, 0
    %p147 = por %p145, %p146
    %s148 = ssub.s32 %s18, %s30
    %s149 = ssub.s32 %s19, %s26
    %s150 = sor.u32 %s148, %s149
    %p151 = scmp.eq.s32.totalorder %s150, 0
    %s153 = sadd.s32 %s152, 1
    %s154 = scalar_select %p151, %s152, %s153
    %p157 = pneg %p151
    %p158 = scmp.eq.s32.totalorder %s11, 1
    %p159 = por %p157, %p158
    %p160 = scmp.ne.s32.totalorder %s152, %s155
    %p161 = scmp.eq.s32.totalorder %s11, 0
    %p162 = por %p160, %p161
    %p163 = scmp.ne.s32.totalorder %s152, %s155
    %p164 = scmp.eq.s32.totalorder %s16, 1
    %p165 = por %p163, %p164
    %p166 = scmp.ne.s32.totalorder %s155, %s156
    %p167 = scmp.eq.s32.totalorder %s16, 0
    %p168 = por %p166, %p167
    %p169 = scmp.ne.s32.totalorder %s155, %s156
    %p170 = scmp.eq.s32.totalorder %s17, 1
    %p171 = por %p169, %p170
    %p173 = scmp.ne.s32.totalorder %s156, %s172
    %p174 = scmp.eq.s32.totalorder %s17, 0
    %p175 = por %p173, %p174
    %p176 = scmp.le.s32.totalorder 1, %s11
    %p177 = scmp.lt.s32.totalorder %s11, 3
    %p178 = pnand %p176, %p177
    %p179 = pneg %p178
    // Predicated region
    $region9: #{big_model_forward.12} parent=5 // pred_check
      _
    $region10: #{big_model_forward.12} parent=5 // pred_check_branch
      %181 = sbr.rel (%p178) target = $region12
    $region11: #{big_model_forward.12} parent=5 // pred_region
      %s182 = ssub.s32 %s11, 1
      // Predicated region
      $region13: #{big_model_forward.12} parent=11 // pred_check
        %p183 = pneg %p77
      $region14: #{big_model_forward.12} parent=11 // pred_check_branch
        %185 = sbr.rel (%p183) target = $region16
      $region15: #{big_model_forward.12} parent=11 // pred_region
        %p186 = scmp.lt.s32.totalorder %s21, 0
        %s187 = scalar_select %p186, %s21, 0
        %s188 = smul.addr %s187, 8
        %s189 = scalar_lea.vmem %s1, %s188
      $region16: #{big_model_forward.12} parent=11 // pred_fallthru
        _
      // Predicated region
      $region17: #{big_model_forward.12} parent=11 // pred_check
        %p190 = pneg %p98
      $region18: #{big_model_forward.12} parent=11 // pred_check_branch
        %192 = sbr.rel (%p190) target = $region20
      $region19: #{big_model_forward.12} parent=11 // pred_region
        _
      $region20: #{big_model_forward.12} parent=11 // pred_fallthru
        _
      // Predicated region
      $region21: #{big_model_forward.12} parent=11 // pred_check
        %p193 = pneg %p119
      $region22: #{big_model_forward.12} parent=11 // pred_check_branch
        %195 = sbr.rel (%p193) target = $region24
      $region23: #{big_model_forward.12} parent=11 // pred_region
        _
      $region24: #{big_model_forward.12} parent=11 // pred_fallthru
        _
      // Predicated region
      $region25: #{big_model_forward.12} parent=11 // pred_check
        %p196 = pneg %p140
      $region26: #{big_model_forward.12} parent=11 // pred_check_branch
        %198 = sbr.rel (%p196) target = $region28
      $region27: #{big_model_forward.12} parent=11 // pred_region
        _
      $region28: #{big_model_forward.12} parent=11 // pred_fallthru
        _
    $region12: #{big_model_forward.12} parent=5 // pred_fallthru
      _
    %p199 = scmp.lt.s32.totalorder %s11, 2
    // Predicated region
    $region29: #{big_model_forward.12} parent=5 // pred_check
      %p200 = pneg %p199
    $region30: #{big_model_forward.12} parent=5 // pred_check_branch
      %202 = sbr.rel (%p200) target = $region32
    $region31: #{big_model_forward.12} parent=5 // pred_region
      // Predicated region
      $region33: #{big_model_forward.12} parent=31 // pred_check
        %p203 = pneg %p45
      $region34: #{big_model_forward.12} parent=31 // pred_check_branch
        %205 = sbr.rel (%p203) target = $region36
      $region35: #{big_model_forward.12} parent=31 // pred_region
        %p206 = scmp.lt.s32.totalorder %s18, 1
        %s207 = scalar_select %p206, %s18, 1
        %p208 = scmp.lt.s32.totalorder %s19, 0
        %s209 = scalar_select %p208, %s19, 0
        %s210 = sadd.s32 %s209, %s207
        %s211 = smul.addr %s210, 8
        %s212 = scalar_lea.vmem %s0, %s211
      $region36: #{big_model_forward.12} parent=31 // pred_fallthru
        _
    $region32: #{big_model_forward.12} parent=5 // pred_fallthru
      _
    %p213 = scmp.le.s32.totalorder 1, %s11
    %p214 = scmp.lt.s32.totalorder %s11, 3
    %p215 = pnand %p213, %p214
    %p216 = pneg %p215
    // Predicated region
    $region37: #{big_model_forward.12} parent=5 // pred_check
      _
    $region38: #{big_model_forward.12} parent=5 // pred_check_branch
      %218 = sbr.rel (%p215) target = $region40
    $region39: #{big_model_forward.12} parent=5 // pred_region
      %s219 = ssub.s32 %s11, 1
      %p220 = scmp.lt.s32.totalorder %s20, 1
      %s221 = scalar_select %p220, %s20, 1
      %p222 = scmp.lt.s32.totalorder %s21, 0
      %s223 = scalar_select %p222, %s21, 0
      %s224 = sadd.s32 %s223, %s221
      %s225 = smul.addr %s224, 8
      %s226 = scalar_lea.vmem %s0, %s225
      %p227 = pneg %p51
      %p228 = pneg %p48
      %p229 = scmp.lt.s32.totalorder %s21, 0
      %s230 = scalar_select %p229, %s21, 0
      %s231 = smul.addr %s230, 8
      %s232 = scalar_lea.vmem %s1, %s231
      %p233 = pneg %p77
      %p234 = pneg %p74
      %p235 = pneg %p98
      %p236 = pneg %p95
      %p237 = pneg %p119
      %p238 = pneg %p116
      %p239 = pneg %p140
      %p240 = pneg %p137
      %p241 = pneg %p168
      %p242 = pneg %p165
      %p243 = scmp.lt.s32.totalorder %s20, 1
      %s244 = scalar_select %p243, %s20, 1
      %p245 = scmp.lt.s32.totalorder %s21, 0
      %s246 = scalar_select %p245, %s21, 0
      %s247 = sadd.s32 %s246, %s244
      %s248 = smul.addr %s247, 4
      %s249 = scalar_lea.vmem %s5, %s248
      %p250 = scmp.lt.s32.totalorder %s20, 1
      %s251 = scalar_select %p250, %s20, 1
      %p252 = scmp.lt.s32.totalorder %s21, 0
      %s253 = scalar_select %p252, %s21, 0
      %s254 = sadd.s32 %s253, %s251
      %s255 = smul.addr %s254, 8
      %s256 = scalar_lea.vmem %s0, %s255
      %p257 = scmp.lt.s32.totalorder %s21, 0
      %s258 = scalar_select %p257, %s21, 0
      %s259 = smul.addr %s258, 8
      %s260 = scalar_lea.vmem %s1, %s259
      %p261 = scmp.lt.s32.totalorder %s20, 1
      %s262 = scalar_select %p261, %s20, 1
      %p263 = scmp.lt.s32.totalorder %s21, 0
      %s264 = scalar_select %p263, %s21, 0
      %s265 = sadd.s32 %s264, %s262
      %s266 = smul.addr %s265, 4
      %s267 = scalar_lea.vmem %s5, %s266
      %v268 = vld [vmem:[%s256] sm:$0xff]
      %v269 = vld [vmem:[%s260] sm:$0xff]
      %v270 = vadd.f32 %v268, %v269
      %v271 = vld [vmem:[%s2] sm:$0x1]
      %v273 = vlaneseq
      %v274 = vshrl.u32 %v273, 7
      %v275 = vsub.s32 0, %v274
      %v276 = vrot.slane %v271, %v275
      %v278 = vadd.f32 %v270, %v276
      %vm279 = vcmask 261120
      %v280 = vsel %vm279, %v278, 0.0
      %281 = vadd.xlane.f32.xlu0 %v280
      %v282 = vpop.xlane.xlu0 %281
      %v283 = vrcp.pop 32.0
      %v284 = vmul.f32 %v282, %v283
      %v285 = vsub.f32 %v278, %v284
      %v286 = vmul.f32 %v285, %v285
      %v287 = vsel %vm279, %v286, 0.0
      %288 = vadd.xlane.f32.xlu0 %v287
      %v289 = vpop.xlane.xlu0 %288
      %v290 = vmul.f32 %v289, %v283
      %v291 = vadd.f32 %v290, 1e-12
      %v292 = vrsqrt.pop %v291
      %v293 = vmul.f32 %v285, %v292
      %v294 = vld [vmem:[%s3] sm:$0x1]
      %v296 = vlaneseq
      %v297 = vshrl.u32 %v296, 7
      %v298 = vsub.s32 0, %v297
      %v299 = vrot.slane %v294, %v298
      %v301 = vmul.f32 %v293, %v299
      %v302 = vld [vmem:[%s4] sm:$0x1]
      %v304 = vlaneseq
      %v305 = vshrl.u32 %v304, 7
      %v306 = vsub.s32 0, %v305
      %v307 = vrot.slane %v302, %v306
      %v309 = vadd.f32 %v301, %v307
      %v310 = vpack.c.bf16 %v309, %v309
      %vm311 = vcmask 257024
      %312 = vst.msk [vmem:[%s267] sm:$0xf] %vm311, %v310
      %p313 = scmp.lt.s32.totalorder %s20, 1
      %s314 = scalar_select %p313, %s20, 1
      %p315 = scmp.lt.s32.totalorder %s21, 0
      %s316 = scalar_select %p315, %s21, 0
      %s317 = sadd.s32 %s316, %s314
      %s318 = smul.addr %s317, 4
      %s319 = scalar_lea.vmem %s5, %s318
      // Predicated region
      $region41: #{big_model_forward.12} parent=39 // pred_check
        %p320 = pneg %p165
      $region42: #{big_model_forward.12} parent=39 // pred_check_branch
        %322 = sbr.rel (%p320) target = $region44
      $region43: #{big_model_forward.12} parent=39 // pred_region
        _
      $region44: #{big_model_forward.12} parent=39 // pred_fallthru
        _
    $region40: #{big_model_forward.12} parent=5 // pred_fallthru
      _
    %p323 = scmp.le.s32.totalorder 2, %s11
    // Predicated region
    $region45: #{big_model_forward.12} parent=5 // pred_check
      %p324 = pneg %p323
    $region46: #{big_model_forward.12} parent=5 // pred_check_branch
      %326 = sbr.rel (%p324) target = $region48
    $region47: #{big_model_forward.12} parent=5 // pred_region
      %s327 = ssub.s32 %s11, 2
      // Predicated region
      $region49: #{big_model_forward.12} parent=47 // pred_check
        %p328 = pneg %p171
      $region50: #{big_model_forward.12} parent=47 // pred_check_branch
        %330 = sbr.rel (%p328) target = $region52
      $region51: #{big_model_forward.12} parent=47 // pred_region
        %p331 = scmp.lt.s32.totalorder %s22, 1
        %s332 = scalar_select %p331, %s22, 1
        %p333 = scmp.lt.s32.totalorder %s23, 0
        %s334 = scalar_select %p333, %s23, 0
        %s335 = sadd.s32 %s334, %s332
        %s336 = smul.addr %s335, 4
        %s337 = scalar_lea.vmem %s5, %s336
      $region52: #{big_model_forward.12} parent=47 // pred_fallthru
        _
    $region48: #{big_model_forward.12} parent=5 // pred_fallthru
      _
  $region6: #{big_model_forward.12} parent=0 // loop_footer
    %s15 = sadd.s32 1, %s11
  $region7: #{big_model_forward.12} parent=0 // loop_footer_branch
    %10 = sbr.rel target = $region3
  $region8: #{big_model_forward.12} parent=0 // loop_exit
    _

// kernel: big_model_forward.13
$region0: #{big_model_forward.13}
  #allocation0 [shape = 'u32[]', space=smem, size = 0x4, offset = 0x4, fixed_abs, tag = 'smem constant byte address 0x4 - core index']
  #allocation1 [shape = 'u32[144,128]{1,0:T(1,128)}', space=vmem, size = 0x12000, scoped, tag = 'internal scratch']
  %s0 = inlined_call_operand.vmem [shape: bf16[16,32], index: 0, kind: input, shape index: {}]
  %s1 = inlined_call_operand.vmem [shape: bf16[32,96], index: 1, kind: input, shape index: {}]
  %s2 = inlined_call_operand.vmem [shape: f32[1,96], index: 2, kind: input, shape index: {}]
  %s3 = inlined_call_operand.vmem [shape: bf16[16,96], index: 3, kind: output, shape index: {}]
  %s4 = sld [smem:[#allocation0]]
  $region22: #{big_model_forward.13} parent=0
    _
  %s6 = ssub.s32 1, %s4
  %s7 = scalar_select 0, %s6, %s4
  // Predicated region
  $region2: #{big_model_forward.13} parent=0 // pred_check
    _
  $region3: #{big_model_forward.13} parent=0 // pred_check_branch
    %9 = sbr.rel (0) target = $region5
  $region4: #{big_model_forward.13} parent=0 // pred_region
    _
  $region5: #{big_model_forward.13} parent=0 // pred_fallthru
    _
  // Predicated region
  $region6: #{big_model_forward.13} parent=0 // pred_check
    _
  $region7: #{big_model_forward.13} parent=0 // pred_check_branch
    %11 = sbr.rel (0) target = $region9
  $region8: #{big_model_forward.13} parent=0 // pred_region
    _
  $region9: #{big_model_forward.13} parent=0 // pred_fallthru
    _
  // Predicated region
  $region10: #{big_model_forward.13} parent=0 // pred_check
    _
  $region11: #{big_model_forward.13} parent=0 // pred_check_branch
    %13 = sbr.rel (0) target = $region13
  $region12: #{big_model_forward.13} parent=0 // pred_region
    _
  $region13: #{big_model_forward.13} parent=0 // pred_fallthru
    _
  %v15 = vld [vmem:[%s0] sm:$0xf]
  %v16 = vld [vmem:[%s0 + $0x4] sm:$0xf]
  %v17 = vld [vmem:[%s1] sm:$0xf]
  %v18 = vld [vmem:[%s1 + $0x4] sm:$0xf]
  %v19 = vld [vmem:[%s1 + $0x8] sm:$0xf]
  %v20 = vld [vmem:[%s1 + $0xc] sm:$0xf]
  %v21 = vld [vmem:[%s2] sm:$0x1]
  %v23 = vlaneseq
  %v24 = vshrl.u32 %v23, 7
  %v25 = vsub.s32 0, %v24
  %v26 = vrot.slane %v21, %v25
  %v30 = vunpack.c.l.b16 %v15
  %v31 = vunpack.c.l.b16 %v16
  %v32 = vpack.c.b16 %v31, %v30
  %v37 = vunpack.c.l.b16 %v17
  %v38 = vunpack.c.l.b16 %v18
  %v39 = vunpack.c.l.b16 %v19
  %v40 = vunpack.c.l.b16 %v20
  %v41 = vpack.c.b16 %v38, %v37
  %v42 = vpack.c.b16 %v40, %v39
  %vm45 = vcmask 261120
  %v47 = vsel %vm45, %v32, 0
  %49 = vmatprep.subr.bf16.mxu0 0
  %50 = vmatpush1.bf16.msra.mxu0 0
  %51 = vmatprep.subr.bf16.mxu0 0
  %52 = vmatpush1.bf16.msra.mxu0 0
  %53 = vmatprep.subr.bf16.mxu0 0
  %54 = vmatpush1.bf16.msra.mxu0 0
  %55 = vmatprep.subr.bf16.mxu0 0
  %56 = vmatpush1.bf16.msra.mxu0 0
  %57 = vmatprep.subr.bf16.mxu0 0
  %58 = vmatpush1.bf16.msra.mxu0 0
  %59 = vmatprep.subr.bf16.mxu0 0
  %60 = vmatpush1.bf16.msra.mxu0 0
  %61 = vmatprep.subr.bf16.mxu0 0
  %62 = vmatpush1.bf16.msra.mxu0 %v42
  %63 = vmatprep.subr.bf16.mxu0 0
  %64 = vmatpush1.bf16.msra.mxu0 %v41
  %65 = vmatprep.subr.bf16.mxu0 0
  %66 = vmatpush2.bf16.msra.mxu0 0
  %67 = vmatprep.subr.bf16.mxu0 0
  %68 = vmatpush2.bf16.msra.mxu0 0
  %69 = vmatprep.subr.bf16.mxu0 0
  %70 = vmatpush2.bf16.msra.mxu0 0
  %71 = vmatprep.subr.bf16.mxu0 0
  %72 = vmatpush2.bf16.msra.mxu0 0
  %73 = vmatprep.subr.bf16.mxu0 0
  %74 = vmatpush2.bf16.msra.mxu0 0
  %75 = vmatprep.subr.bf16.mxu0 0
  %76 = vmatpush2.bf16.msra.mxu0 0
  %77 = vmatprep.subr.bf16.mxu0 0
  %78 = vmatpush2.bf16.msra.mxu0 0
  %79 = vmatprep.subr.bf16.mxu0 0
  %80 = vmatpush2.bf16.msra.mxu0 0
  %81 = vmatprep.mubr.bf16.mxu0 0
  %82 = vmatmul.mubr.bf16.gmra.mxu0 %v47
  %v83 = vpop.f32.mrf.mxu0
  %v84 = vadd.f32 %v26, %v83
  %v85 = vpop.f32.mrf.mxu0
  %v86 = vpop.f32.mrf.mxu0
  %v87 = vadd.f32 %v26, %v86
  %v88 = vpop.f32.mrf.mxu0
  %89 = vdwg.mxu0
  %v90 = vpack.c.bf16 %v87, %v84
  %v92 = vunpack.c.l.b16 %v90
  %v93 = vunpack.c.h.b16 %v90
  %v94 = vpack.c.b16 %v92, %v92
  %v95 = vpack.c.b16 %v93, %v93
  %vm98 = vcmask 781312
  %99 = vst.msk [vmem:[%s3] sm:$0xf] %vm98, %v94
  %100 = vst.msk [vmem:[%s3 + $0x4] sm:$0xf] %vm98, %v95
  // Predicated region
  $region14: #{big_model_forward.13} parent=0 // pred_check
    _
  $region15: #{big_model_forward.13} parent=0 // pred_check_branch
    %102 = sbr.rel (0) target = $region17
  $region16: #{big_model_forward.13} parent=0 // pred_region
    _
  $region17: #{big_model_forward.13} parent=0 // pred_fallthru
    _
  // Predicated region
  $region18: #{big_model_forward.13} parent=0 // pred_check
    _
  $region19: #{big_model_forward.13} parent=0 // pred_check_branch
    %104 = sbr.rel (0) target = $region21
  $region20: #{big_model_forward.13} parent=0 // pred_region
    _
  $region21: #{big_model_forward.13} parent=0 // pred_fallthru
    _

// kernel: big_model_forward.14
$region0: #{big_model_forward.14}
  #allocation0 [shape = 'u32[]', space=smem, size = 0x4, offset = 0x4, fixed_abs, tag = 'smem constant byte address 0x4 - core index']
  #allocation1 [shape = 'u32[144,128]{1,0:T(1,128)}', space=vmem, size = 0x12000, scoped, tag = 'internal scratch']
  %s0 = inlined_call_operand.vmem [shape: bf16[2,4,8,8], index: 0, kind: input, shape index: {}]
  %s1 = inlined_call_operand.vmem [shape: bf16[2,4,8,8], index: 1, kind: input, shape index: {}]
  %s2 = inlined_call_operand.vmem [shape: bf16[2,4,8,8], index: 2, kind: input, shape index: {}]
  %s3 = inlined_call_operand.vmem [shape: f32[2,1,8], index: 3, kind: input, shape index: {}]
  %s4 = inlined_call_operand.vmem [shape: bf16[2,4,8,8], index: 4, kind: output, shape index: {}]
  %s5 = sld [smem:[#allocation0]]
  $region49: #{big_model_forward.14} parent=0
    _
  %s7 = ssub.s32 1, %s5
  %s8 = scalar_select 0, %s7, %s5
  loop: start=0, step=1, limit=10
  $region2: #{big_model_forward.14} parent=0 // loop_pre_header
    _
  $region3: #{big_model_forward.14} parent=0 // loop_header
    %s10 = sphi 0, %s14
    %p11 = scmp.ge.s32.totalorder %s10, 10
    %s17 = sphi 0, %s29
    %s18 = sphi 0, %s25
    %s19 = sphi 0, %s17
    %s20 = sphi 0, %s18
    %s21 = sphi 0, %s19
    %s22 = sphi 0, %s20
    %s34 = sphi 0, %s36
    %s37 = sphi 0, %s34
    %s38 = sphi 0, %s37
    %s54 = sphi 0, %s38
    %s62 = sphi 0, %s64
    %s65 = sphi 0, %s62
    %s66 = sphi 0, %s65
    %s82 = sphi 0, %s66
    %s90 = sphi 0, %s92
    %s93 = sphi 0, %s90
    %s94 = sphi 0, %s93
    %s110 = sphi 0, %s94
    %s116 = sphi 0, %s118
    %s119 = sphi 0, %s116
    %s120 = sphi 0, %s119
    %s136 = sphi 0, %s120
    %s144 = sphi 0, %s146
    %s147 = sphi 0, %s144
    %s148 = sphi 0, %s147
    %s164 = sphi 0, %s148
  $region4: #{big_model_forward.14} parent=0 // loop_header_branch
    %13 = sbr.rel (%p11) target = $region8
  $region5: #{big_model_forward.14} parent=0 // loop_body
    %s15 = ssub.s32 %s10, 1
    %s16 = ssub.s32 %s10, 2
    %s23 = sadd.s32 1, %s18
    %p24 = scmp.ge.s32.totalorder %s23, 4
    %s25 = scalar_select %p24, 0, %s23
    %s26 = sadd.s32 1, %s17
    %s27 = scalar_select %p24, %s26, %s17
    %p28 = scmp.ge.s32.totalorder %s27, 2
    %s29 = scalar_select %p28, 0, %s27
    %s30 = ssub.s32 %s17, %s29
    %s31 = ssub.s32 %s18, %s25
    %s32 = sor.u32 %s30, %s31
    %p33 = scmp.eq.s32.totalorder %s32, 0
    %s35 = sadd.s32 %s34, 1
    %s36 = scalar_select %p33, %s34, %s35
    %p39 = pneg %p33
    %p40 = scmp.eq.s32.totalorder %s10, 7
    %p41 = por %p39, %p40
    %p42 = scmp.ne.s32.totalorder %s34, %s37
    %p43 = scmp.eq.s32.totalorder %s10, 0
    %p44 = por %p42, %p43
    %p45 = scmp.ne.s32.totalorder %s34, %s37
    %p46 = scmp.eq.s32.totalorder %s15, 7
    %p47 = por %p45, %p46
    %p48 = scmp.ne.s32.totalorder %s37, %s38
    %p49 = scmp.eq.s32.totalorder %s15, 0
    %p50 = por %p48, %p49
    %p51 = scmp.ne.s32.totalorder %s37, %s38
    %p52 = scmp.eq.s32.totalorder %s16, 7
    %p53 = por %p51, %p52
    %p55 = scmp.ne.s32.totalorder %s38, %s54
    %p56 = scmp.eq.s32.totalorder %s16, 0
    %p57 = por %p55, %p56
    %s58 = ssub.s32 %s17, %s29
    %s59 = ssub.s32 %s18, %s25
    %s60 = sor.u32 %s58, %s59
    %p61 = scmp.eq.s32.totalorder %s60, 0
    %s63 = sadd.s32 %s62, 1
    %s64 = scalar_select %p61, %s62, %s63
    %p67 = pneg %p61
    %p68 = scmp.eq.s32.totalorder %s10, 7
    %p69 = por %p67, %p68
    %p70 = scmp.ne.s32.totalorder %s62, %s65
    %p71 = scmp.eq.s32.totalorder %s10, 0
    %p72 = por %p70, %p71
    %p73 = scmp.ne.s32.totalorder %s62, %s65
    %p74 = scmp.eq.s32.totalorder %s15, 7
    %p75 = por %p73, %p74
    %p76 = scmp.ne.s32.totalorder %s65, %s66
    %p77 = scmp.eq.s32.totalorder %s15, 0
    %p78 = por %p76, %p77
    %p79 = scmp.ne.s32.totalorder %s65, %s66
    %p80 = scmp.eq.s32.totalorder %s16, 7
    %p81 = por %p79, %p80
    %p83 = scmp.ne.s32.totalorder %s66, %s82
    %p84 = scmp.eq.s32.totalorder %s16, 0
    %p85 = por %p83, %p84
    %s86 = ssub.s32 %s17, %s29
    %s87 = ssub.s32 %s18, %s25
    %s88 = sor.u32 %s86, %s87
    %p89 = scmp.eq.s32.totalorder %s88, 0
    %s91 = sadd.s32 %s90, 1
    %s92 = scalar_select %p89, %s90, %s91
    %p95 = pneg %p89
    %p96 = scmp.eq.s32.totalorder %s10, 7
    %p97 = por %p95, %p96
    %p98 = scmp.ne.s32.totalorder %s90, %s93
    %p99 = scmp.eq.s32.totalorder %s10, 0
    %p100 = por %p98, %p99
    %p101 = scmp.ne.s32.totalorder %s90, %s93
    %p102 = scmp.eq.s32.totalorder %s15, 7
    %p103 = por %p101, %p102
    %p104 = scmp.ne.s32.totalorder %s93, %s94
    %p105 = scmp.eq.s32.totalorder %s15, 0
    %p106 = por %p104, %p105
    %p107 = scmp.ne.s32.totalorder %s93, %s94
    %p108 = scmp.eq.s32.totalorder %s16, 7
    %p109 = por %p107, %p108
    %p111 = scmp.ne.s32.totalorder %s94, %s110
    %p112 = scmp.eq.s32.totalorder %s16, 0
    %p113 = por %p111, %p112
    %s114 = ssub.s32 %s17, %s29
    %p115 = scmp.eq.s32.totalorder %s114, 0
    %s117 = sadd.s32 %s116, 1
    %s118 = scalar_select %p115, %s116, %s117
    %p121 = pneg %p115
    %p122 = scmp.eq.s32.totalorder %s10, 7
    %p123 = por %p121, %p122
    %p124 = scmp.ne.s32.totalorder %s116, %s119
    %p125 = scmp.eq.s32.totalorder %s10, 0
    %p126 = por %p124, %p125
    %p127 = scmp.ne.s32.totalorder %s116, %s119
    %p128 = scmp.eq.s32.totalorder %s15, 7
    %p129 = por %p127, %p128
    %p130 = scmp.ne.s32.totalorder %s119, %s120
    %p131 = scmp.eq.s32.totalorder %s15, 0
    %p132 = por %p130, %p131
    %p133 = scmp.ne.s32.totalorder %s119, %s120
    %p134 = scmp.eq.s32.totalorder %s16, 7
    %p135 = por %p133, %p134
    %p137 = scmp.ne.s32.totalorder %s120, %s136
    %p138 = scmp.eq.s32.totalorder %s16, 0
    %p139 = por %p137, %p138
    %s140 = ssub.s32 %s17, %s29
    %s141 = ssub.s32 %s18, %s25
    %s142 = sor.u32 %s140, %s141
    %p143 = scmp.eq.s32.totalorder %s142, 0
    %s145 = sadd.s32 %s144, 1
    %s146 = scalar_select %p143, %s144, %s145
    %p149 = pneg %p143
    %p150 = scmp.eq.s32.totalorder %s10, 7
    %p151 = por %p149, %p150
    %p152 = scmp.ne.s32.totalorder %s144, %s147
    %p153 = scmp.eq.s32.totalorder %s10, 0
    %p154 = por %p152, %p153
    %p155 = scmp.ne.s32.totalorder %s144, %s147
    %p156 = scmp.eq.s32.totalorder %s15, 7
    %p157 = por %p155, %p156
    %p158 = scmp.ne.s32.totalorder %s147, %s148
    %p159 = scmp.eq.s32.totalorder %s15, 0
    %p160 = por %p158, %p159
    %p161 = scmp.ne.s32.totalorder %s147, %s148
    %p162 = scmp.eq.s32.totalorder %s16, 7
    %p163 = por %p161, %p162
    %p165 = scmp.ne.s32.totalorder %s148, %s164
    %p166 = scmp.eq.s32.totalorder %s16, 0
    %p167 = por %p165, %p166
    %p168 = scmp.le.s32.totalorder 1, %s10
    %p169 = scmp.lt.s32.totalorder %s10, 9
    %p170 = pnand %p168, %p169
    %p171 = pneg %p170
    // Predicated region
    $region9: #{big_model_forward.14} parent=5 // pred_check
      _
    $region10: #{big_model_forward.14} parent=5 // pred_check_branch
      %173 = sbr.rel (%p170) target = $region12
    $region11: #{big_model_forward.14} parent=5 // pred_region
      %s174 = ssub.s32 %s10, 1
    $region12: #{big_model_forward.14} parent=5 // pred_fallthru
      _
    %p175 = scmp.lt.s32.totalorder %s10, 8
    // Predicated region
    $region13: #{big_model_forward.14} parent=5 // pred_check
      %p176 = pneg %p175
    $region14: #{big_model_forward.14} parent=5 // pred_check_branch
      %178 = sbr.rel (%p176) target = $region16
    $region15: #{big_model_forward.14} parent=5 // pred_region
      // Predicated region
      $region17: #{big_model_forward.14} parent=15 // pred_check
        %p179 = pneg %p44
      $region18: #{big_model_forward.14} parent=15 // pred_check_branch
        %181 = sbr.rel (%p179) target = $region20
      $region19: #{big_model_forward.14} parent=15 // pred_region
        %p182 = scmp.lt.s32.totalorder %s17, 1
        %s183 = scalar_select %p182, %s17, 1
        %p184 = scmp.lt.s32.totalorder %s18, 3
        %s185 = scalar_select %p184, %s18, 3
        %s186 = smul.addr %s183, 4
        %s187 = sadd.s32 %s185, %s186
        %s188 = smul.addr %s187, 4
        %s189 = scalar_lea.vmem %s0, %s188
      $region20: #{big_model_forward.14} parent=15 // pred_fallthru
        _
      // Predicated region
      $region21: #{big_model_forward.14} parent=15 // pred_check
        %p190 = pneg %p72
      $region22: #{big_model_forward.14} parent=15 // pred_check_branch
        %192 = sbr.rel (%p190) target = $region24
      $region23: #{big_model_forward.14} parent=15 // pred_region
        %p193 = scmp.lt.s32.totalorder %s17, 1
        %s194 = scalar_select %p193, %s17, 1
        %p195 = scmp.lt.s32.totalorder %s18, 3
        %s196 = scalar_select %p195, %s18, 3
        %s197 = smul.addr %s194, 4
        %s198 = sadd.s32 %s196, %s197
        %s199 = smul.addr %s198, 4
        %s200 = scalar_lea.vmem %s1, %s199
      $region24: #{big_model_forward.14} parent=15 // pred_fallthru
        _
      // Predicated region
      $region25: #{big_model_forward.14} parent=15 // pred_check
        %p201 = pneg %p100
      $region26: #{big_model_forward.14} parent=15 // pred_check_branch
        %203 = sbr.rel (%p201) target = $region28
      $region27: #{big_model_forward.14} parent=15 // pred_region
        %p204 = scmp.lt.s32.totalorder %s17, 1
        %s205 = scalar_select %p204, %s17, 1
        %p206 = scmp.lt.s32.totalorder %s18, 3
        %s207 = scalar_select %p206, %s18, 3
        %s208 = smul.addr %s205, 4
        %s209 = sadd.s32 %s207, %s208
        %s210 = smul.addr %s209, 4
        %s211 = scalar_lea.vmem %s2, %s210
      $region28: #{big_model_forward.14} parent=15 // pred_fallthru
        _
      // Predicated region
      $region29: #{big_model_forward.14} parent=15 // pred_check
        %p212 = pneg %p126
      $region30: #{big_model_forward.14} parent=15 // pred_check_branch
        %214 = sbr.rel (%p212) target = $region32
      $region31: #{big_model_forward.14} parent=15 // pred_region
        %p215 = scmp.lt.s32.totalorder %s17, 1
        %s216 = scalar_select %p215, %s17, 1
        %s217 = scalar_lea.vmem %s3, %s216
      $region32: #{big_model_forward.14} parent=15 // pred_fallthru
        _
    $region16: #{big_model_forward.14} parent=5 // pred_fallthru
      _
    %p218 = scmp.le.s32.totalorder 1, %s10
    %p219 = scmp.lt.s32.totalorder %s10, 9
    %p220 = pnand %p218, %p219
    %p221 = pneg %p220
    // Predicated region
    $region33: #{big_model_forward.14} parent=5 // pred_check
      _
    $region34: #{big_model_forward.14} parent=5 // pred_check_branch
      %223 = sbr.rel (%p220) target = $region36
    $region35: #{big_model_forward.14} parent=5 // pred_region
      %s224 = ssub.s32 %s10, 1
      %p225 = scmp.lt.s32.totalorder %s19, 1
      %s226 = scalar_select %p225, %s19, 1
      %p227 = scmp.lt.s32.totalorder %s20, 3
      %s228 = scalar_select %p227, %s20, 3
      %s229 = smul.addr %s226, 4
      %s230 = sadd.s32 %s228, %s229
      %s231 = smul.addr %s230, 4
      %s232 = scalar_lea.vmem %s0, %s231
      %p233 = pneg %p50
      %p234 = pneg %p47
      %p235 = scmp.lt.s32.totalorder %s19, 1
      %s236 = scalar_select %p235, %s19, 1
      %p237 = scmp.lt.s32.totalorder %s20, 3
      %s238 = scalar_select %p237, %s20, 3
      %s239 = smul.addr %s236, 4
      %s240 = sadd.s32 %s238, %s239
      %s241 = smul.addr %s240, 4
      %s242 = scalar_lea.vmem %s1, %s241
      %p243 = pneg %p78
      %p244 = pneg %p75
      %p245 = scmp.lt.s32.totalorder %s19, 1
      %s246 = scalar_select %p245, %s19, 1
      %p247 = scmp.lt.s32.totalorder %s20, 3
      %s248 = scalar_select %p247, %s20, 3
      %s249 = smul.addr %s246, 4
      %s250 = sadd.s32 %s248, %s249
      %s251 = smul.addr %s250, 4
      %s252 = scalar_lea.vmem %s2, %s251
      %p253 = pneg %p106
      %p254 = pneg %p103
      %p255 = scmp.lt.s32.totalorder %s19, 1
      %s256 = scalar_select %p255, %s19, 1
      %s257 = scalar_lea.vmem %s3, %s256
      %p258 = pneg %p132
      %p259 = pneg %p129
      %p260 = pneg %p160
      %p261 = pneg %p157
      %p262 = scmp.lt.s32.totalorder %s19, 1
      %s263 = scalar_select %p262, %s19, 1
      %p264 = scmp.lt.s32.totalorder %s20, 3
      %s265 = scalar_select %p264, %s20, 3
      %s266 = smul.addr %s263, 4
      %s267 = sadd.s32 %s265, %s266
      %s268 = smul.addr %s267, 4
      %s269 = scalar_lea.vmem %s4, %s268
      %p270 = scmp.lt.s32.totalorder %s19, 1
      %s271 = scalar_select %p270, %s19, 1
      %p272 = scmp.lt.s32.totalorder %s20, 3
      %s273 = scalar_select %p272, %s20, 3
      %s274 = smul.addr %s271, 4
      %s275 = sadd.s32 %s273, %s274
      %s276 = smul.addr %s275, 4
      %s277 = scalar_lea.vmem %s0, %s276
      %p278 = scmp.lt.s32.totalorder %s19, 1
      %s279 = scalar_select %p278, %s19, 1
      %p280 = scmp.lt.s32.totalorder %s20, 3
      %s281 = scalar_select %p280, %s20, 3
      %s282 = smul.addr %s279, 4
      %s283 = sadd.s32 %s281, %s282
      %s284 = smul.addr %s283, 4
      %s285 = scalar_lea.vmem %s1, %s284
      %p286 = scmp.lt.s32.totalorder %s19, 1
      %s287 = scalar_select %p286, %s19, 1
      %p288 = scmp.lt.s32.totalorder %s20, 3
      %s289 = scalar_select %p288, %s20, 3
      %s290 = smul.addr %s287, 4
      %s291 = sadd.s32 %s289, %s290
      %s292 = smul.addr %s291, 4
      %s293 = scalar_lea.vmem %s2, %s292
      %p294 = scmp.lt.s32.totalorder %s19, 1
      %s295 = scalar_select %p294, %s19, 1
      %s296 = scalar_lea.vmem %s3, %s295
      %p297 = scmp.lt.s32.totalorder %s19, 1
      %s298 = scalar_select %p297, %s19, 1
      %p299 = scmp.lt.s32.totalorder %s20, 3
      %s300 = scalar_select %p299, %s20, 3
      %s301 = smul.addr %s298, 4
      %s302 = sadd.s32 %s300, %s301
      %s303 = smul.addr %s302, 4
      %s304 = scalar_lea.vmem %s4, %s303
      %v306 = vld [vmem:[%s277] sm:$0xf]
      %v307 = vld [vmem:[%s285] sm:$0xf]
      %v308 = vld [vmem:[%s293] sm:$0xf]
      %v309 = vld [vmem:[%s296] sm:$0x1]
      %v311 = vlaneseq
      %v312 = vshrl.u32 %v311, 7
      %v313 = vsub.s32 0, %v312
      %v314 = vrot.slane %v309, %v313
      %vm316 = vcmask 64512
      %v318 = vsel %vm316, %v306, 0
      %v321 = vsel %vm316, %v307, 0
      %323 = vmatprep.subr.bf16.mxu0 0
      %324 = vmatpush1.bf16.xpose.msra.mxu0 0
      %325 = vmatprep.subr.bf16.mxu0 0
      %326 = vmatpush1.bf16.xpose.msra.mxu0 0
      %327 = vmatprep.subr.bf16.mxu0 0
      %328 = vmatpush1.bf16.xpose.msra.mxu0 0
      %329 = vmatprep.subr.bf16.mxu0 0
      %330 = vmatpush1.bf16.xpose.msra.mxu0 0
      %331 = vmatprep.subr.bf16.mxu0 0
      %332 = vmatpush1.bf16.xpose.msra.mxu0 0
      %333 = vmatprep.subr.bf16.mxu0 0
      %334 = vmatpush1.bf16.xpose.msra.mxu0 0
      %335 = vmatprep.subr.bf16.mxu0 0
      %336 = vmatpush1.bf16.xpose.msra.mxu0 0
      %337 = vmatprep.subr.bf16.mxu0 0
      %338 = vmatpush1.bf16.xpose.msra.mxu0 %v321
      %339 = vmatprep.subr.bf16.mxu0 0
      %340 = vmatpush2.bf16.xpose.msra.mxu0 0
      %341 = vmatprep.subr.bf16.mxu0 0
      %342 = vmatpush2.bf16.xpose.msra.mxu0 0
      %343 = vmatprep.subr.bf16.mxu0 0
      %344 = vmatpush2.bf16.xpose.msra.mxu0 0
      %345 = vmatprep.subr.bf16.mxu0 0
      %346 = vmatpush2.bf16.xpose.msra.mxu0 0
      %347 = vmatprep.subr.bf16.mxu0 0
      %348 = vmatpush2.bf16.xpose.msra.mxu0 0
      %349 = vmatprep.subr.bf16.mxu0 0
      %350 = vmatpush2.bf16.xpose.msra.mxu0 0
      %351 = vmatprep.subr.bf16.mxu0 0
      %352 = vmatpush2.bf16.xpose.msra.mxu0 0
      %353 = vmatprep.subr.bf16.mxu0 0
      %354 = vmatpush2.bf16.xpose.msra.mxu0 0
      %355 = vmatprep.mubr.bf16.mxu0 0
      %356 = vmatmul.mubr.bf16.gmra.mxu0 %v318
      %v357 = vpop.f32.mrf.mxu0
      %v358 = vadd.f32 %v314, %v357
      %v359 = vpop.f32.mrf.mxu0
      %v360 = vpop.f32.mrf.mxu0
      %v361 = vpop.f32.mrf.mxu0
      %362 = vdwg.mxu0
      %v363 = vsel %vm316, %v358, -inf
      %364 = vmax.xlane.f32.xlu0 %v363
      %v365 = vpop.xlane.xlu0 %364
      %v366 = vsub.f32 %v358, %v365
      %v367 = vmul.f32 %v366, 1.442695
      %v368 = vpow.pop %v367
      %v369 = vsel %vm316, %v368, 0.0
      %370 = vadd.xlane.f32.xlu0 %v369
      %v371 = vpop.xlane.xlu0 %370
      %v372 = vrcp.pop %v371
      %v373 = vmul.f32 %v368, %v372
      %v374 = vpack.c.bf16 %v373, %v373
      %v376 = vsel %vm316, %v374, 0
      %vm378 = vcmask 1043456
      %v380 = vsel %vm378, %v308, 0
      %382 = vmatprep.subr.bf16.mxu0 0
      %383 = vmatpush1.bf16.msra.mxu0 0
      %384 = vmatprep.subr.bf16.mxu0 0
      %385 = vmatpush1.bf16.msra.mxu0 0
      %386 = vmatprep.subr.bf16.mxu0 0
      %387 = vmatpush1.bf16.msra.mxu0 0
      %388 = vmatprep.subr.bf16.mxu0 0
      %389 = vmatpush1.bf16.msra.mxu0 0
      %390 = vmatprep.subr.bf16.mxu0 0
      %391 = vmatpush1.bf16.msra.mxu0 0
      %392 = vmatprep.subr.bf16.mxu0 0
      %393 = vmatpush1.bf16.msra.mxu0 0
      %394 = vmatprep.subr.bf16.mxu0 0
      %395 = vmatpush1.bf16.msra.mxu0 0
      %396 = vmatprep.subr.bf16.mxu0 0
      %397 = vmatpush1.bf16.msra.mxu0 %v380
      %398 = vmatprep.subr.bf16.mxu0 0
      %399 = vmatpush2.bf16.msra.mxu0 0
      %400 = vmatprep.subr.bf16.mxu0 0
      %401 = vmatpush2.bf16.msra.mxu0 0
      %402 = vmatprep.subr.bf16.mxu0 0
      %403 = vmatpush2.bf16.msra.mxu0 0
      %404 = vmatprep.subr.bf16.mxu0 0
      %405 = vmatpush2.bf16.msra.mxu0 0
      %406 = vmatprep.subr.bf16.mxu0 0
      %407 = vmatpush2.bf16.msra.mxu0 0
      %408 = vmatprep.subr.bf16.mxu0 0
      %409 = vmatpush2.bf16.msra.mxu0 0
      %410 = vmatprep.subr.bf16.mxu0 0
      %411 = vmatpush2.bf16.msra.mxu0 0
      %412 = vmatprep.subr.bf16.mxu0 0
      %413 = vmatpush2.bf16.msra.mxu0 0
      %414 = vmatprep.mubr.bf16.mxu0 0
      %415 = vmatmul.mubr.bf16.gmra.mxu0 %v376
      %v416 = vpop.f32.mrf.mxu0
      %v417 = vadd.f32 0.0, %v416
      %v418 = vpop.f32.mrf.mxu0
      %v419 = vpop.f32.mrf.mxu0
      %v420 = vpop.f32.mrf.mxu0
      %421 = vdwg.mxu0
      %v422 = vpack.c.bf16 %v417, %v417
      %vm423 = vcmask 60416
      %424 = vst.msk [vmem:[%s304] sm:$0xf] %vm423, %v422
      %p425 = scmp.lt.s32.totalorder %s19, 1
      %s426 = scalar_select %p425, %s19, 1
      %p427 = scmp.lt.s32.totalorder %s20, 3
      %s428 = scalar_select %p427, %s20, 3
      %s429 = smul.addr %s426, 4
      %s430 = sadd.s32 %s428, %s429
      %s431 = smul.addr %s430, 4
      %s432 = scalar_lea.vmem %s4, %s431
      // Predicated region
      $region37: #{big_model_forward.14} parent=35 // pred_check
        %p433 = pneg %p157
      $region38: #{big_model_forward.14} parent=35 // pred_check_branch
        %435 = sbr.rel (%p433) target = $region40
      $region39: #{big_model_forward.14} parent=35 // pred_region
        _
      $region40: #{big_model_forward.14} parent=35 // pred_fallthru
        _
    $region36: #{big_model_forward.14} parent=5 // pred_fallthru
      _
    %p436 = scmp.le.s32.totalorder 2, %s10
    // Predicated region
    $region41: #{big_model_forward.14} parent=5 // pred_check
      %p437 = pneg %p436
    $region42: #{big_model_forward.14} parent=5 // pred_check_branch
      %439 = sbr.rel (%p437) target = $region44
    $region43: #{big_model_forward.14} parent=5 // pred_region
      %s440 = ssub.s32 %s10, 2
      // Predicated region
      $region45: #{big_model_forward.14} parent=43 // pred_check
        %p441 = pneg %p163
      $region46: #{big_model_forward.14} parent=43 // pred_check_branch
        %443 = sbr.rel (%p441) target = $region48
      $region47: #{big_model_forward.14} parent=43 // pred_region
        %p444 = scmp.lt.s32.totalorder %s21, 1
        %s445 = scalar_select %p444, %s21, 1
        %p446 = scmp.lt.s32.totalorder %s22, 3
        %s447 = scalar_select %p446, %s22, 3
        %s448 = smul.addr %s445, 4
        %s449 = sadd.s32 %s447, %s448
        %s450 = smul.addr %s449, 4
        %s451 = scalar_lea.vmem %s4, %s450
      $region48: #{big_model_forward.14} parent=43 // pred_fallthru
        _
    $region44: #{big_model_forward.14} parent=5 // pred_fallthru
      _
  $region6: #{big_model_forward.14} parent=0 // loop_footer
    %s14 = sadd.s32 1, %s10
  $region7: #{big_model_forward.14} parent=0 // loop_footer_branch
    %9 = sbr.rel target = $region3
  $region8: #{big_model_forward.14} parent=0 // loop_exit
    _

// kernel: big_model_forward.16
$region0: #{big_model_forward.16}
  #allocation0 [shape = 'u32[]', space=smem, size = 0x4, offset = 0x4, fixed_abs, tag = 'smem constant byte address 0x4 - core index']
  #allocation1 [shape = 'u32[144,128]{1,0:T(1,128)}', space=vmem, size = 0x12000, scoped, tag = 'internal scratch']
  %s0 = inlined_call_operand.vmem [shape: bf16[16,32], index: 0, kind: input, shape index: {}]
  %s1 = inlined_call_operand.vmem [shape: bf16[32,64], index: 1, kind: input, shape index: {}]
  %s2 = inlined_call_operand.vmem [shape: f32[1,64], index: 2, kind: input, shape index: {}]
  %s3 = inlined_call_operand.vmem [shape: bf16[16,64], index: 3, kind: output, shape index: {}]
  %s4 = sld [smem:[#allocation0]]
  $region22: #{big_model_forward.16} parent=0
    _
  %s6 = ssub.s32 1, %s4
  %s7 = scalar_select 0, %s6, %s4
  // Predicated region
  $region2: #{big_model_forward.16} parent=0 // pred_check
    _
  $region3: #{big_model_forward.16} parent=0 // pred_check_branch
    %9 = sbr.rel (0) target = $region5
  $region4: #{big_model_forward.16} parent=0 // pred_region
    _
  $region5: #{big_model_forward.16} parent=0 // pred_fallthru
    _
  // Predicated region
  $region6: #{big_model_forward.16} parent=0 // pred_check
    _
  $region7: #{big_model_forward.16} parent=0 // pred_check_branch
    %11 = sbr.rel (0) target = $region9
  $region8: #{big_model_forward.16} parent=0 // pred_region
    _
  $region9: #{big_model_forward.16} parent=0 // pred_fallthru
    _
  // Predicated region
  $region10: #{big_model_forward.16} parent=0 // pred_check
    _
  $region11: #{big_model_forward.16} parent=0 // pred_check_branch
    %13 = sbr.rel (0) target = $region13
  $region12: #{big_model_forward.16} parent=0 // pred_region
    _
  $region13: #{big_model_forward.16} parent=0 // pred_fallthru
    _
  %v15 = vld [vmem:[%s0] sm:$0xf]
  %v16 = vld [vmem:[%s0 + $0x4] sm:$0xf]
  %v17 = vld [vmem:[%s1] sm:$0xf]
  %v18 = vld [vmem:[%s1 + $0x4] sm:$0xf]
  %v19 = vld [vmem:[%s1 + $0x8] sm:$0xf]
  %v20 = vld [vmem:[%s1 + $0xc] sm:$0xf]
  %v21 = vld [vmem:[%s2] sm:$0x1]
  %v23 = vlaneseq
  %v24 = vshrl.u32 %v23, 7
  %v25 = vsub.s32 0, %v24
  %v26 = vrot.slane %v21, %v25
  %v30 = vunpack.c.l.b16 %v15
  %v31 = vunpack.c.l.b16 %v16
  %v32 = vpack.c.b16 %v31, %v30
  %v37 = vunpack.c.l.b16 %v17
  %v38 = vunpack.c.l.b16 %v18
  %v39 = vunpack.c.l.b16 %v19
  %v40 = vunpack.c.l.b16 %v20
  %v41 = vpack.c.b16 %v38, %v37
  %v42 = vpack.c.b16 %v40, %v39
  %vm45 = vcmask 261120
  %v47 = vsel %vm45, %v32, 0
  %49 = vmatprep.subr.bf16.mxu0 0
  %50 = vmatpush1.bf16.msra.mxu0 0
  %51 = vmatprep.subr.bf16.mxu0 0
  %52 = vmatpush1.bf16.msra.mxu0 0
  %53 = vmatprep.subr.bf16.mxu0 0
  %54 = vmatpush1.bf16.msra.mxu0 0
  %55 = vmatprep.subr.bf16.mxu0 0
  %56 = vmatpush1.bf16.msra.mxu0 0
  %57 = vmatprep.subr.bf16.mxu0 0
  %58 = vmatpush1.bf16.msra.mxu0 0
  %59 = vmatprep.subr.bf16.mxu0 0
  %60 = vmatpush1.bf16.msra.mxu0 0
  %61 = vmatprep.subr.bf16.mxu0 0
  %62 = vmatpush1.bf16.msra.mxu0 %v42
  %63 = vmatprep.subr.bf16.mxu0 0
  %64 = vmatpush1.bf16.msra.mxu0 %v41
  %65 = vmatprep.subr.bf16.mxu0 0
  %66 = vmatpush2.bf16.msra.mxu0 0
  %67 = vmatprep.subr.bf16.mxu0 0
  %68 = vmatpush2.bf16.msra.mxu0 0
  %69 = vmatprep.subr.bf16.mxu0 0
  %70 = vmatpush2.bf16.msra.mxu0 0
  %71 = vmatprep.subr.bf16.mxu0 0
  %72 = vmatpush2.bf16.msra.mxu0 0
  %73 = vmatprep.subr.bf16.mxu0 0
  %74 = vmatpush2.bf16.msra.mxu0 0
  %75 = vmatprep.subr.bf16.mxu0 0
  %76 = vmatpush2.bf16.msra.mxu0 0
  %77 = vmatprep.subr.bf16.mxu0 0
  %78 = vmatpush2.bf16.msra.mxu0 0
  %79 = vmatprep.subr.bf16.mxu0 0
  %80 = vmatpush2.bf16.msra.mxu0 0
  %81 = vmatprep.mubr.bf16.mxu0 0
  %82 = vmatmul.mubr.bf16.gmra.mxu0 %v47
  %v83 = vpop.f32.mrf.mxu0
  %v84 = vadd.f32 %v26, %v83
  %v85 = vpop.f32.mrf.mxu0
  %v86 = vpop.f32.mrf.mxu0
  %v87 = vadd.f32 %v26, %v86
  %v88 = vpop.f32.mrf.mxu0
  %89 = vdwg.mxu0
  %v90 = vmul.f32 %v84, 0.5
  %v91 = vmul.f32 %v87, 0.5
  %v92 = vmul.f32 %v84, 0.044715
  %v93 = vmul.f32 %v87, 0.044715
  %v94 = vmul.f32 %v92, %v84
  %v95 = vmul.f32 %v93, %v87
  %v96 = vmul.f32 %v94, %v84
  %v97 = vmul.f32 %v95, %v87
  %v98 = vadd.f32 %v84, %v96
  %v99 = vadd.f32 %v87, %v97
  %v100 = vmul.f32 %v98, 0.7978846
  %v101 = vmul.f32 %v99, 0.7978846
  %v102 = vtanh.pop %v100
  %v103 = vtanh.pop %v101
  %v104 = vadd.f32 %v102, 1.0
  %v105 = vadd.f32 %v103, 1.0
  %v106 = vmul.f32 %v90, %v104
  %v107 = vmul.f32 %v91, %v105
  %v108 = vpack.c.bf16 %v107, %v106
  %v110 = vunpack.c.l.b16 %v108
  %v111 = vunpack.c.h.b16 %v108
  %v112 = vpack.c.b16 %v110, %v110
  %v113 = vpack.c.b16 %v111, %v111
  %vm116 = vcmask 519168
  %117 = vst.msk [vmem:[%s3] sm:$0xf] %vm116, %v112
  %118 = vst.msk [vmem:[%s3 + $0x4] sm:$0xf] %vm116, %v113
  // Predicated region
  $region14: #{big_model_forward.16} parent=0 // pred_check
    _
  $region15: #{big_model_forward.16} parent=0 // pred_check_branch
    %120 = sbr.rel (0) target = $region17
  $region16: #{big_model_forward.16} parent=0 // pred_region
    _
  $region17: #{big_model_forward.16} parent=0 // pred_fallthru
    _
  // Predicated region
  $region18: #{big_model_forward.16} parent=0 // pred_check
    _
  $region19: #{big_model_forward.16} parent=0 // pred_check_branch
    %122 = sbr.rel (0) target = $region21
  $region20: #{big_model_forward.16} parent=0 // pred_region
    _
  $region21: #{big_model_forward.16} parent=0 // pred_fallthru
    _

// kernel: big_model_forward.15
$region0: #{big_model_forward.15}
  #allocation0 [shape = 'u32[]', space=smem, size = 0x4, offset = 0x4, fixed_abs, tag = 'smem constant byte address 0x4 - core index']
  #allocation1 [shape = 'u32[144,128]{1,0:T(1,128)}', space=vmem, size = 0x12000, scoped, tag = 'internal scratch']
  %s0 = inlined_call_operand.vmem [shape: bf16[16,32], index: 0, kind: input, shape index: {}]
  %s1 = inlined_call_operand.vmem [shape: bf16[32,32], index: 1, kind: input, shape index: {}]
  %s2 = inlined_call_operand.vmem [shape: f32[1,32], index: 2, kind: input, shape index: {}]
  %s3 = inlined_call_operand.vmem [shape: bf16[16,32], index: 3, kind: input, shape index: {}]
  %s4 = inlined_call_operand.vmem [shape: f32[1,32], index: 4, kind: input, shape index: {}]
  %s5 = inlined_call_operand.vmem [shape: f32[1,32], index: 5, kind: input, shape index: {}]
  %s6 = inlined_call_operand.vmem [shape: bf16[16,32], index: 6, kind: output, shape index: {}]
  %s7 = sld [smem:[#allocation0]]
  $region34: #{big_model_forward.15} parent=0
    _
  %s9 = ssub.s32 1, %s7
  %s10 = scalar_select 0, %s9, %s7
  // Predicated region
  $region2: #{big_model_forward.15} parent=0 // pred_check
    _
  $region3: #{big_model_forward.15} parent=0 // pred_check_branch
    %12 = sbr.rel (0) target = $region5
  $region4: #{big_model_forward.15} parent=0 // pred_region
    _
  $region5: #{big_model_forward.15} parent=0 // pred_fallthru
    _
  // Predicated region
  $region6: #{big_model_forward.15} parent=0 // pred_check
    _
  $region7: #{big_model_forward.15} parent=0 // pred_check_branch
    %14 = sbr.rel (0) target = $region9
  $region8: #{big_model_forward.15} parent=0 // pred_region
    _
  $region9: #{big_model_forward.15} parent=0 // pred_fallthru
    _
  // Predicated region
  $region10: #{big_model_forward.15} parent=0 // pred_check
    _
  $region11: #{big_model_forward.15} parent=0 // pred_check_branch
    %16 = sbr.rel (0) target = $region13
  $region12: #{big_model_forward.15} parent=0 // pred_region
    _
  $region13: #{big_model_forward.15} parent=0 // pred_fallthru
    _
  // Predicated region
  $region14: #{big_model_forward.15} parent=0 // pred_check
    _
  $region15: #{big_model_forward.15} parent=0 // pred_check_branch
    %18 = sbr.rel (0) target = $region17
  $region16: #{big_model_forward.15} parent=0 // pred_region
    _
  $region17: #{big_model_forward.15} parent=0 // pred_fallthru
    _
  // Predicated region
  $region18: #{big_model_forward.15} parent=0 // pred_check
    _
  $region19: #{big_model_forward.15} parent=0 // pred_check_branch
    %20 = sbr.rel (0) target = $region21
  $region20: #{big_model_forward.15} parent=0 // pred_region
    _
  $region21: #{big_model_forward.15} parent=0 // pred_fallthru
    _
  // Predicated region
  $region22: #{big_model_forward.15} parent=0 // pred_check
    _
  $region23: #{big_model_forward.15} parent=0 // pred_check_branch
    %22 = sbr.rel (0) target = $region25
  $region24: #{big_model_forward.15} parent=0 // pred_region
    _
  $region25: #{big_model_forward.15} parent=0 // pred_fallthru
    _
  %v24 = vld [vmem:[%s0] sm:$0xf]
  %v25 = vld [vmem:[%s0 + $0x4] sm:$0xf]
  %v26 = vld [vmem:[%s1] sm:$0xf]
  %v27 = vld [vmem:[%s1 + $0x4] sm:$0xf]
  %v28 = vld [vmem:[%s1 + $0x8] sm:$0xf]
  %v29 = vld [vmem:[%s1 + $0xc] sm:$0xf]
  %v30 = vld [vmem:[%s2] sm:$0x1]
  %v32 = vlaneseq
  %v33 = vshrl.u32 %v32, 7
  %v34 = vsub.s32 0, %v33
  %v35 = vrot.slane %v30, %v34
  %v39 = vunpack.c.l.b16 %v24
  %v40 = vunpack.c.l.b16 %v25
  %v41 = vpack.c.b16 %v40, %v39
  %v46 = vunpack.c.l.b16 %v26
  %v47 = vunpack.c.l.b16 %v27
  %v48 = vunpack.c.l.b16 %v28
  %v49 = vunpack.c.l.b16 %v29
  %v50 = vpack.c.b16 %v47, %v46
  %v51 = vpack.c.b16 %v49, %v48
  %vm54 = vcmask 261120
  %v56 = vsel %vm54, %v41, 0
  %58 = vmatprep.subr.bf16.mxu0 0
  %59 = vmatpush1.bf16.msra.mxu0 0
  %60 = vmatprep.subr.bf16.mxu0 0
  %61 = vmatpush1.bf16.msra.mxu0 0
  %62 = vmatprep.subr.bf16.mxu0 0
  %63 = vmatpush1.bf16.msra.mxu0 0
  %64 = vmatprep.subr.bf16.mxu0 0
  %65 = vmatpush1.bf16.msra.mxu0 0
  %66 = vmatprep.subr.bf16.mxu0 0
  %67 = vmatpush1.bf16.msra.mxu0 0
  %68 = vmatprep.subr.bf16.mxu0 0
  %69 = vmatpush1.bf16.msra.mxu0 0
  %70 = vmatprep.subr.bf16.mxu0 0
  %71 = vmatpush1.bf16.msra.mxu0 %v51
  %72 = vmatprep.subr.bf16.mxu0 0
  %73 = vmatpush1.bf16.msra.mxu0 %v50
  %74 = vmatprep.subr.bf16.mxu0 0
  %75 = vmatpush2.bf16.msra.mxu0 0
  %76 = vmatprep.subr.bf16.mxu0 0
  %77 = vmatpush2.bf16.msra.mxu0 0
  %78 = vmatprep.subr.bf16.mxu0 0
  %79 = vmatpush2.bf16.msra.mxu0 0
  %80 = vmatprep.subr.bf16.mxu0 0
  %81 = vmatpush2.bf16.msra.mxu0 0
  %82 = vmatprep.subr.bf16.mxu0 0
  %83 = vmatpush2.bf16.msra.mxu0 0
  %84 = vmatprep.subr.bf16.mxu0 0
  %85 = vmatpush2.bf16.msra.mxu0 0
  %86 = vmatprep.subr.bf16.mxu0 0
  %87 = vmatpush2.bf16.msra.mxu0 0
  %88 = vmatprep.subr.bf16.mxu0 0
  %89 = vmatpush2.bf16.msra.mxu0 0
  %90 = vmatprep.mubr.bf16.mxu0 0
  %91 = vmatmul.mubr.bf16.gmra.mxu0 %v56
  %v92 = vpop.f32.mrf.mxu0
  %v93 = vadd.f32 %v35, %v92
  %v94 = vpop.f32.mrf.mxu0
  %v95 = vpop.f32.mrf.mxu0
  %v96 = vadd.f32 %v35, %v95
  %v97 = vpop.f32.mrf.mxu0
  %98 = vdwg.mxu0
  %v99 = vld [vmem:[%s3] sm:$0xf]
  %v100 = vld [vmem:[%s3 + $0x4] sm:$0xf]
  %v101 = vunpack.c.l.bf16 %v99
  %v102 = vunpack.c.l.bf16 %v100
  %v103 = vadd.f32 %v93, %v101
  %v104 = vadd.f32 %v96, %v102
  %v105 = vsel %vm54, %v103, 0.0
  %106 = vadd.xlane.f32.xlu0 %v105
  %v107 = vpop.xlane.xlu0 %106
  %v108 = vsel %vm54, %v104, 0.0
  %109 = vadd.xlane.f32.xlu0 %v108
  %v110 = vpop.xlane.xlu0 %109
  %v111 = vrcp.pop 32.0
  %v112 = vmul.f32 %v107, %v111
  %v113 = vmul.f32 %v110, %v111
  %v114 = vsub.f32 %v103, %v112
  %v115 = vsub.f32 %v104, %v113
  %v116 = vmul.f32 %v114, %v114
  %v117 = vmul.f32 %v115, %v115
  %v118 = vsel %vm54, %v116, 0.0
  %119 = vadd.xlane.f32.xlu0 %v118
  %v120 = vpop.xlane.xlu0 %119
  %v121 = vsel %vm54, %v117, 0.0
  %122 = vadd.xlane.f32.xlu0 %v121
  %v123 = vpop.xlane.xlu0 %122
  %v124 = vmul.f32 %v120, %v111
  %v125 = vmul.f32 %v123, %v111
  %v126 = vadd.f32 %v124, 1e-12
  %v127 = vadd.f32 %v125, 1e-12
  %v128 = vrsqrt.pop %v126
  %v129 = vrsqrt.pop %v127
  %v130 = vmul.f32 %v114, %v128
  %v131 = vmul.f32 %v115, %v129
  %v132 = vld [vmem:[%s4] sm:$0x1]
  %v134 = vlaneseq
  %v135 = vshrl.u32 %v134, 7
  %v136 = vsub.s32 0, %v135
  %v137 = vrot.slane %v132, %v136
  %v139 = vmul.f32 %v130, %v137
  %v140 = vmul.f32 %v131, %v137
  %v141 = vld [vmem:[%s5] sm:$0x1]
  %v143 = vlaneseq
  %v144 = vshrl.u32 %v143, 7
  %v145 = vsub.s32 0, %v144
  %v146 = vrot.slane %v141, %v145
  %v148 = vadd.f32 %v139, %v146
  %v149 = vadd.f32 %v140, %v146
  %v150 = vpack.c.bf16 %v149, %v148
  %v152 = vunpack.c.l.b16 %v150
  %v153 = vunpack.c.h.b16 %v150
  %v154 = vpack.c.b16 %v152, %v152
  %v155 = vpack.c.b16 %v153, %v153
  %vm158 = vcmask 257024
  %159 = vst.msk [vmem:[%s6] sm:$0xf] %vm158, %v154
  %160 = vst.msk [vmem:[%s6 + $0x4] sm:$0xf] %vm158, %v155
  // Predicated region
  $region26: #{big_model_forward.15} parent=0 // pred_check
    _
  $region27: #{big_model_forward.15} parent=0 // pred_check_branch
    %162 = sbr.rel (0) target = $region29
  $region28: #{big_model_forward.15} parent=0 // pred_region
    _
  $region29: #{big_model_forward.15} parent=0 // pred_fallthru
    _
  // Predicated region
  $region30: #{big_model_forward.15} parent=0 // pred_check
    _
  $region31: #{big_model_forward.15} parent=0 // pred_check_branch
    %164 = sbr.rel (0) target = $region33
  $region32: #{big_model_forward.15} parent=0 // pred_region
    _
  $region33: #{big_model_forward.15} parent=0 // pred_fallthru
    _

// kernel: big_model_forward.17
$region0: #{big_model_forward.17}
  #allocation0 [shape = 'u32[]', space=smem, size = 0x4, offset = 0x4, fixed_abs, tag = 'smem constant byte address 0x4 - core index']
  #allocation1 [shape = 'u32[144,128]{1,0:T(1,128)}', space=vmem, size = 0x12000, scoped, tag = 'internal scratch']
  %s0 = inlined_call_operand.vmem [shape: bf16[16,64], index: 0, kind: input, shape index: {}]
  %s1 = inlined_call_operand.vmem [shape: bf16[64,32], index: 1, kind: input, shape index: {}]
  %s2 = inlined_call_operand.vmem [shape: f32[1,32], index: 2, kind: input, shape index: {}]
  %s3 = inlined_call_operand.vmem [shape: bf16[16,32], index: 3, kind: input, shape index: {}]
  %s4 = inlined_call_operand.vmem [shape: f32[1,32], index: 4, kind: input, shape index: {}]
  %s5 = inlined_call_operand.vmem [shape: f32[1,32], index: 5, kind: input, shape index: {}]
  %s6 = inlined_call_operand.vmem [shape: bf16[16,32], index: 6, kind: output, shape index: {}]
  %s7 = sld [smem:[#allocation0]]
  $region34: #{big_model_forward.17} parent=0
    _
  %s9 = ssub.s32 1, %s7
  %s10 = scalar_select 0, %s9, %s7
  // Predicated region
  $region2: #{big_model_forward.17} parent=0 // pred_check
    _
  $region3: #{big_model_forward.17} parent=0 // pred_check_branch
    %12 = sbr.rel (0) target = $region5
  $region4: #{big_model_forward.17} parent=0 // pred_region
    _
  $region5: #{big_model_forward.17} parent=0 // pred_fallthru
    _
  // Predicated region
  $region6: #{big_model_forward.17} parent=0 // pred_check
    _
  $region7: #{big_model_forward.17} parent=0 // pred_check_branch
    %14 = sbr.rel (0) target = $region9
  $region8: #{big_model_forward.17} parent=0 // pred_region
    _
  $region9: #{big_model_forward.17} parent=0 // pred_fallthru
    _
  // Predicated region
  $region10: #{big_model_forward.17} parent=0 // pred_check
    _
  $region11: #{big_model_forward.17} parent=0 // pred_check_branch
    %16 = sbr.rel (0) target = $region13
  $region12: #{big_model_forward.17} parent=0 // pred_region
    _
  $region13: #{big_model_forward.17} parent=0 // pred_fallthru
    _
  // Predicated region
  $region14: #{big_model_forward.17} parent=0 // pred_check
    _
  $region15: #{big_model_forward.17} parent=0 // pred_check_branch
    %18 = sbr.rel (0) target = $region17
  $region16: #{big_model_forward.17} parent=0 // pred_region
    _
  $region17: #{big_model_forward.17} parent=0 // pred_fallthru
    _
  // Predicated region
  $region18: #{big_model_forward.17} parent=0 // pred_check
    _
  $region19: #{big_model_forward.17} parent=0 // pred_check_branch
    %20 = sbr.rel (0) target = $region21
  $region20: #{big_model_forward.17} parent=0 // pred_region
    _
  $region21: #{big_model_forward.17} parent=0 // pred_fallthru
    _
  // Predicated region
  $region22: #{big_model_forward.17} parent=0 // pred_check
    _
  $region23: #{big_model_forward.17} parent=0 // pred_check_branch
    %22 = sbr.rel (0) target = $region25
  $region24: #{big_model_forward.17} parent=0 // pred_region
    _
  $region25: #{big_model_forward.17} parent=0 // pred_fallthru
    _
  %v24 = vld [vmem:[%s0] sm:$0xf]
  %v25 = vld [vmem:[%s0 + $0x4] sm:$0xf]
  %v26 = vld [vmem:[%s1] sm:$0xf]
  %v27 = vld [vmem:[%s1 + $0x4] sm:$0xf]
  %v28 = vld [vmem:[%s1 + $0x8] sm:$0xf]
  %v29 = vld [vmem:[%s1 + $0xc] sm:$0xf]
  %v30 = vld [vmem:[%s1 + $0x10] sm:$0xf]
  %v31 = vld [vmem:[%s1 + $0x14] sm:$0xf]
  %v32 = vld [vmem:[%s1 + $0x18] sm:$0xf]
  %v33 = vld [vmem:[%s1 + $0x1c] sm:$0xf]
  %v34 = vld [vmem:[%s2] sm:$0x1]
  %v36 = vlaneseq
  %v37 = vshrl.u32 %v36, 7
  %v38 = vsub.s32 0, %v37
  %v39 = vrot.slane %v34, %v38
  %v43 = vunpack.c.l.b16 %v24
  %v44 = vunpack.c.l.b16 %v25
  %v45 = vpack.c.b16 %v44, %v43
  %v54 = vunpack.c.l.b16 %v26
  %v55 = vunpack.c.l.b16 %v27
  %v56 = vunpack.c.l.b16 %v28
  %v57 = vunpack.c.l.b16 %v29
  %v58 = vunpack.c.l.b16 %v30
  %v59 = vunpack.c.l.b16 %v31
  %v60 = vunpack.c.l.b16 %v32
  %v61 = vunpack.c.l.b16 %v33
  %v62 = vpack.c.b16 %v55, %v54
  %v63 = vpack.c.b16 %v57, %v56
  %v64 = vpack.c.b16 %v59, %v58
  %v65 = vpack.c.b16 %v61, %v60
  %vm70 = vcmask 523264
  %v72 = vsel %vm70, %v45, 0
  %74 = vmatprep.subr.bf16.mxu0 0
  %75 = vmatpush1.bf16.msra.mxu0 0
  %76 = vmatprep.subr.bf16.mxu0 0
  %77 = vmatpush1.bf16.msra.mxu0 0
  %78 = vmatprep.subr.bf16.mxu0 0
  %79 = vmatpush1.bf16.msra.mxu0 0
  %80 = vmatprep.subr.bf16.mxu0 0
  %81 = vmatpush1.bf16.msra.mxu0 0
  %82 = vmatprep.subr.bf16.mxu0 0
  %83 = vmatpush1.bf16.msra.mxu0 %v65
  %84 = vmatprep.subr.bf16.mxu0 0
  %85 = vmatpush1.bf16.msra.mxu0 %v64
  %86 = vmatprep.subr.bf16.mxu0 0
  %87 = vmatpush1.bf16.msra.mxu0 %v63
  %88 = vmatprep.subr.bf16.mxu0 0
  %89 = vmatpush1.bf16.msra.mxu0 %v62
  %90 = vmatprep.subr.bf16.mxu0 0
  %91 = vmatpush2.bf16.msra.mxu0 0
  %92 = vmatprep.subr.bf16.mxu0 0
  %93 = vmatpush2.bf16.msra.mxu0 0
  %94 = vmatprep.subr.bf16.mxu0 0
  %95 = vmatpush2.bf16.msra.mxu0 0
  %96 = vmatprep.subr.bf16.mxu0 0
  %97 = vmatpush2.bf16.msra.mxu0 0
  %98 = vmatprep.subr.bf16.mxu0 0
  %99 = vmatpush2.bf16.msra.mxu0 0
  %100 = vmatprep.subr.bf16.mxu0 0
  %101 = vmatpush2.bf16.msra.mxu0 0
  %102 = vmatprep.subr.bf16.mxu0 0
  %103 = vmatpush2.bf16.msra.mxu0 0
  %104 = vmatprep.subr.bf16.mxu0 0
  %105 = vmatpush2.bf16.msra.mxu0 0
  %106 = vmatprep.mubr.bf16.mxu0 0
  %107 = vmatmul.mubr.bf16.gmra.mxu0 %v72
  %v108 = vpop.f32.mrf.mxu0
  %v109 = vadd.f32 %v39, %v108
  %v110 = vpop.f32.mrf.mxu0
  %v111 = vpop.f32.mrf.mxu0
  %v112 = vadd.f32 %v39, %v111
  %v113 = vpop.f32.mrf.mxu0
  %114 = vdwg.mxu0
  %v115 = vld [vmem:[%s3] sm:$0xf]
  %v116 = vld [vmem:[%s3 + $0x4] sm:$0xf]
  %v117 = vunpack.c.l.bf16 %v115
  %v118 = vunpack.c.l.bf16 %v116
  %v119 = vadd.f32 %v109, %v117
  %v120 = vadd.f32 %v112, %v118
  %vm121 = vcmask 261120
  %v122 = vsel %vm121, %v119, 0.0
  %123 = vadd.xlane.f32.xlu0 %v122
  %v124 = vpop.xlane.xlu0 %123
  %v125 = vsel %vm121, %v120, 0.0
  %126 = vadd.xlane.f32.xlu0 %v125
  %v127 = vpop.xlane.xlu0 %126
  %v128 = vrcp.pop 32.0
  %v129 = vmul.f32 %v124, %v128
  %v130 = vmul.f32 %v127, %v128
  %v131 = vsub.f32 %v119, %v129
  %v132 = vsub.f32 %v120, %v130
  %v133 = vmul.f32 %v131, %v131
  %v134 = vmul.f32 %v132, %v132
  %v135 = vsel %vm121, %v133, 0.0
  %136 = vadd.xlane.f32.xlu0 %v135
  %v137 = vpop.xlane.xlu0 %136
  %v138 = vsel %vm121, %v134, 0.0
  %139 = vadd.xlane.f32.xlu0 %v138
  %v140 = vpop.xlane.xlu0 %139
  %v141 = vmul.f32 %v137, %v128
  %v142 = vmul.f32 %v140, %v128
  %v143 = vadd.f32 %v141, 1e-12
  %v144 = vadd.f32 %v142, 1e-12
  %v145 = vrsqrt.pop %v143
  %v146 = vrsqrt.pop %v144
  %v147 = vmul.f32 %v131, %v145
  %v148 = vmul.f32 %v132, %v146
  %v149 = vld [vmem:[%s4] sm:$0x1]
  %v151 = vlaneseq
  %v152 = vshrl.u32 %v151, 7
  %v153 = vsub.s32 0, %v152
  %v154 = vrot.slane %v149, %v153
  %v156 = vmul.f32 %v147, %v154
  %v157 = vmul.f32 %v148, %v154
  %v158 = vld [vmem:[%s5] sm:$0x1]
  %v160 = vlaneseq
  %v161 = vshrl.u32 %v160, 7
  %v162 = vsub.s32 0, %v161
  %v163 = vrot.slane %v158, %v162
  %v165 = vadd.f32 %v156, %v163
  %v166 = vadd.f32 %v157, %v163
  %v167 = vpack.c.bf16 %v166, %v165
  %v169 = vunpack.c.l.b16 %v167
  %v170 = vunpack.c.h.b16 %v167
  %v171 = vpack.c.b16 %v169, %v169
  %v172 = vpack.c.b16 %v170, %v170
  %vm175 = vcmask 257024
  %176 = vst.msk [vmem:[%s6] sm:$0xf] %vm175, %v171
  %177 = vst.msk [vmem:[%s6 + $0x4] sm:$0xf] %vm175, %v172
  // Predicated region
  $region26: #{big_model_forward.17} parent=0 // pred_check
    _
  $region27: #{big_model_forward.17} parent=0 // pred_check_branch
    %179 = sbr.rel (0) target = $region29
  $region28: #{big_model_forward.17} parent=0 // pred_region
    _
  $region29: #{big_model_forward.17} parent=0 // pred_fallthru
    _
  // Predicated region
  $region30: #{big_model_forward.17} parent=0 // pred_check
    _
  $region31: #{big_model_forward.17} parent=0 // pred_check_branch
    %181 = sbr.rel (0) target = $region33
  $region32: #{big_model_forward.17} parent=0 // pred_region
    _
  $region33: #{big_model_forward.17} parent=0 // pred_fallthru
    _

// kernel: big_model_forward.23
$region0: #{big_model_forward.23}
  #allocation0 [shape = 'u32[]', space=smem, size = 0x4, offset = 0x4, fixed_abs, tag = 'smem constant byte address 0x4 - core index']
  #allocation1 [shape = 'u32[144,128]{1,0:T(1,128)}', space=vmem, size = 0x12000, scoped, tag = 'internal scratch']
  %s0 = inlined_call_operand.vmem [shape: bf16[2,32], index: 0, kind: input, shape index: {}]
  %s1 = inlined_call_operand.vmem [shape: bf16[32,32], index: 1, kind: input, shape index: {}]
  %s2 = inlined_call_operand.vmem [shape: f32[1,32], index: 2, kind: input, shape index: {}]
  %s3 = inlined_call_operand.hbm [shape: f32[2,32], index: 3, kind: output, shape index: {}]
  %s4 = sld [smem:[#allocation0]]
  $region22: #{big_model_forward.23} parent=0
    _
  %s6 = ssub.s32 1, %s4
  %s7 = scalar_select 0, %s6, %s4
  $region1: #{big_model_forward.23} parent=0
    #allocation2 [shape = 'u8[1024]{0}', space=vmem, size = 0x400, scoped, tag = 'output window, operand 0, single buffered']
    #allocation3 [shape = 's32[1]{0}', space=sflag, size = 0x4, scoped, tag = 'scoped memory for big_model_forward.23']
    %8 = vsyncpa [#allocation3], 0
    // Predicated region
    $region2: #{big_model_forward.23} parent=1 // pred_check
      _
    $region3: #{big_model_forward.23} parent=1 // pred_check_branch
      %10 = sbr.rel (0) target = $region5
    $region4: #{big_model_forward.23} parent=1 // pred_region
      _
    $region5: #{big_model_forward.23} parent=1 // pred_fallthru
      _
    // Predicated region
    $region6: #{big_model_forward.23} parent=1 // pred_check
      _
    $region7: #{big_model_forward.23} parent=1 // pred_check_branch
      %12 = sbr.rel (0) target = $region9
    $region8: #{big_model_forward.23} parent=1 // pred_region
      _
    $region9: #{big_model_forward.23} parent=1 // pred_fallthru
      _
    // Predicated region
    $region10: #{big_model_forward.23} parent=1 // pred_check
      _
    $region11: #{big_model_forward.23} parent=1 // pred_check_branch
      %14 = sbr.rel (0) target = $region13
    $region12: #{big_model_forward.23} parent=1 // pred_region
      _
    $region13: #{big_model_forward.23} parent=1 // pred_fallthru
      _
    %v16 = vld [vmem:[%s0] sm:$0x1]
    %v17 = vld [vmem:[%s1] sm:$0xf]
    %v18 = vld [vmem:[%s1 + $0x4] sm:$0xf]
    %v19 = vld [vmem:[%s1 + $0x8] sm:$0xf]
    %v20 = vld [vmem:[%s1 + $0xc] sm:$0xf]
    %v21 = vld [vmem:[%s2] sm:$0x1]
    %v23 = vlaneseq
    %v24 = vshrl.u32 %v23, 7
    %v25 = vsub.s32 0, %v24
    %v26 = vrot.slane %v21, %v25
    %v32 = vunpack.c.l.b16 %v17
    %v33 = vunpack.c.l.b16 %v18
    %v34 = vunpack.c.l.b16 %v19
    %v35 = vunpack.c.l.b16 %v20
    %v36 = vpack.c.b16 %v33, %v32
    %v37 = vpack.c.b16 %v35, %v34
    %vm40 = vcmask 261120
    %v42 = vsel %vm40, %v16, 0
    %44 = vmatprep.subr.bf16.mxu0 0
    %45 = vmatpush1.bf16.msra.mxu0 0
    %46 = vmatprep.subr.bf16.mxu0 0
    %47 = vmatpush1.bf16.msra.mxu0 0
    %48 = vmatprep.subr.bf16.mxu0 0
    %49 = vmatpush1.bf16.msra.mxu0 0
    %50 = vmatprep.subr.bf16.mxu0 0
    %51 = vmatpush1.bf16.msra.mxu0 0
    %52 = vmatprep.subr.bf16.mxu0 0
    %53 = vmatpush1.bf16.msra.mxu0 0
    %54 = vmatprep.subr.bf16.mxu0 0
    %55 = vmatpush1.bf16.msra.mxu0 0
    %56 = vmatprep.subr.bf16.mxu0 0
    %57 = vmatpush1.bf16.msra.mxu0 %v37
    %58 = vmatprep.subr.bf16.mxu0 0
    %59 = vmatpush1.bf16.msra.mxu0 %v36
    %60 = vmatprep.subr.bf16.mxu0 0
    %61 = vmatpush2.bf16.msra.mxu0 0
    %62 = vmatprep.subr.bf16.mxu0 0
    %63 = vmatpush2.bf16.msra.mxu0 0
    %64 = vmatprep.subr.bf16.mxu0 0
    %65 = vmatpush2.bf16.msra.mxu0 0
    %66 = vmatprep.subr.bf16.mxu0 0
    %67 = vmatpush2.bf16.msra.mxu0 0
    %68 = vmatprep.subr.bf16.mxu0 0
    %69 = vmatpush2.bf16.msra.mxu0 0
    %70 = vmatprep.subr.bf16.mxu0 0
    %71 = vmatpush2.bf16.msra.mxu0 0
    %72 = vmatprep.subr.bf16.mxu0 0
    %73 = vmatpush2.bf16.msra.mxu0 0
    %74 = vmatprep.subr.bf16.mxu0 0
    %75 = vmatpush2.bf16.msra.mxu0 0
    %76 = vmatprep.mubr.bf16.mxu0 0
    %77 = vmatmul.mubr.bf16.gmra.mxu0 %v42
    %v78 = vpop.f32.mrf.mxu0
    %v79 = vadd.f32 %v26, %v78
    %v80 = vpop.f32.mrf.mxu0
    %v81 = vpop.f32.mrf.mxu0
    %v82 = vpop.f32.mrf.mxu0
    %83 = vdwg.mxu0
    %v84 = vtanh.pop %v79
    %vm85 = vcmask 254976
    %86 = vst.msk [vmem:[#allocation2] sm:$0x3] %vm85, %v84
    // Predicated region
    $region14: #{big_model_forward.23} parent=1 // pred_check
      _
    $region15: #{big_model_forward.23} parent=1 // pred_check_branch
      %88 = sbr.rel (0) target = $region17
    $region16: #{big_model_forward.23} parent=1 // pred_region
      %s90 = ssub.s32 32, 32
      %91 = vsyncadd [#allocation3], %s90
      %s93 = sshll.u32 [#allocation2], 4
      %s94 = int_to_ptr.vmem [resolvable:$true] %s93
      %96 = dma.vmem_to_hbm [thread:$0]  %s94, 32, %s3, [#allocation3]
    $region17: #{big_model_forward.23} parent=1 // pred_fallthru
      _
    // Predicated region
    $region18: #{big_model_forward.23} parent=1 // pred_check
      _
    $region19: #{big_model_forward.23} parent=1 // pred_check_branch
      %98 = sbr.rel (0) target = $region21
    $region20: #{big_model_forward.23} parent=1 // pred_region
      %99 = dma.done [#allocation3], 32
    $region21: #{big_model_forward.23} parent=1 // pred_fallthru
      _
    %100 = vsyncpa [#allocation3], 1

</llo_original>
